<compile_context>
chip_gen: v6e
topology: v6e:2x2x1
jax: 0.10.0
libtpu: 0.0.40
codegen_flags: <defaults>
</compile_context>

<pallas_src>
import jax
import jax.numpy as jnp
from jax.experimental import pallas as pl
from jax.experimental.pallas import tpu as pltpu

# ---------------- config (small, TPU-tile friendly) ----------------
VOCAB = 64
TYPE_VOCAB = 2
MAX_POS = 16
HIDDEN = 128
HEADS = 2
HEAD_DIM = HIDDEN // HEADS
INTER = 256
LAYERS = 2
EPS = 1e-12          # BERT LayerNorm eps
B, S = 2, 8          # batch, sequence


# ---------------- in-kernel helpers ----------------
def _layernorm(x, gamma, beta):
    mu = jnp.mean(x, axis=-1, keepdims=True)
    var = jnp.mean(jnp.square(x - mu), axis=-1, keepdims=True)
    return (x - mu) * jax.lax.rsqrt(var + EPS) * gamma + beta


def _gelu(x):
    # TODO(synk): HF BERT default is exact erf-GELU; tanh approximation used
    # here because erf lowering in Mosaic is not guaranteed on all chips.
    return 0.5 * x * (1.0 + jnp.tanh(0.7978845608028654 * (x + 0.044715 * x * x * x)))


# ---------------- fused forward kernel ----------------
def mixtext_fused_kernel(
        # embeddings / mask (vary with batch grid axis only)
        wemb_ref, pemb_ref, temb_ref, eg_ref, eb_ref, bias_ref,
        # stacked per-layer weights (vary with layer grid axis only)
        wqkv_ref, bqkv_ref, wo_ref, bo_ref, g1_ref, b1_ref,
        wi_ref, bi_ref, wf_ref, bf_ref, g2_ref, b2_ref,
        # output + scratch
        out_ref, h_scr):
    l = pl.program_id(1)

    # ---- first layer step for this batch element: embeddings sum + LN ----
    @pl.when(l == 0)
    def _():
        x = wemb_ref[0] + pemb_ref[...] + temb_ref[0]            # (S, H)
        h_scr[...] = _layernorm(x, eg_ref[...], eb_ref[...])

    h = h_scr[...]                                               # (S, H) f32
    h_bf = h.astype(jnp.bfloat16)

    # ---- fused QKV projection: one (S,H) @ (H,3H) MXU push ----
    qkv = (jnp.dot(h_bf, wqkv_ref[0], preferred_element_type=jnp.float32)
           + bqkv_ref[0])                                        # (S, 3H) f32
    q = qkv[:, 0 * HIDDEN:1 * HIDDEN]
    k = qkv[:, 1 * HIDDEN:2 * HIDDEN]
    v = qkv[:, 2 * HIDDEN:3 * HIDDEN]

    # head-batched attention: (HEADS, S, HEAD_DIM) with head as batch dim
    q_h = jnp.stack([q[:, hd * HEAD_DIM:(hd + 1) * HEAD_DIM] for hd in range(HEADS)], 0)
    k_h = jnp.stack([k[:, hd * HEAD_DIM:(hd + 1) * HEAD_DIM] for hd in range(HEADS)], 0)
    v_h = jnp.stack([v[:, hd * HEAD_DIM:(hd + 1) * HEAD_DIM] for hd in range(HEADS)], 0)

    scale = HEAD_DIM ** -0.5
    bias3 = bias_ref[...]                                        # (1, 1, S), hoisted
    scores = jnp.einsum('hqd,hkd->hqk', q_h, k_h,
                        preferred_element_type=jnp.float32) * scale + bias3
    m = jnp.max(scores, axis=-1, keepdims=True)
    e = jnp.exp(scores - m)
    probs = e * pl.reciprocal(jnp.sum(e, axis=-1, keepdims=True), approx=True)
    ctx_h = jnp.einsum('hqk,hkd->hqd', probs, v_h,
                       preferred_element_type=jnp.float32)       # (HEADS, S, D)
    ctx = jnp.concatenate([ctx_h[hd] for hd in range(HEADS)], axis=-1)  # (S, H)

    # ---- attention output projection + residual LN ----
    attn = (jnp.dot(ctx.astype(jnp.bfloat16), wo_ref[0],
                    preferred_element_type=jnp.float32) + bo_ref[0])
    x1 = _layernorm(attn + h, g1_ref[0], b1_ref[0])

    # ---- FFN + residual LN ----
    inter = _gelu(jnp.dot(x1.astype(jnp.bfloat16), wi_ref[0],
                          preferred_element_type=jnp.float32) + bi_ref[0])
    ffn = (jnp.dot(inter.astype(jnp.bfloat16), wf_ref[0],
                   preferred_element_type=jnp.float32) + bf_ref[0])
    x2 = _layernorm(ffn + x1, g2_ref[0], b2_ref[0])

    h_scr[...] = x2                                              # carry to next layer

    # ---- last layer: mean-pool over sequence -> pooled output ----
    @pl.when(l == pl.num_programs(1) - 1)
    def _():
        out_ref[0] = jnp.mean(x2, axis=0, keepdims=True)         # (1, H)


# ---------------- pallas_call wrapper ----------------
def mixtext_pallas(wemb, pemb, temb, emb_ln_g, emb_ln_b, mask_bias, p):
    bmap = lambda b, l: (b, 0, 0)      # per-batch blocks
    lmap = lambda b, l: (l, 0, 0)      # per-layer (stacked) blocks

    pooled3 = pl.pallas_call(
        mixtext_fused_kernel,
        out_shape=jax.ShapeDtypeStruct((B, 1, HIDDEN), jnp.float32),
        grid_spec=pltpu.PrefetchScalarGridSpec(
            num_scalar_prefetch=0,
            grid=(B, LAYERS),
            in_specs=[
                pl.BlockSpec((1, S, HIDDEN), bmap),               # word emb
                pl.BlockSpec((S, HIDDEN), lambda b, l: (0, 0)),   # pos emb
                pl.BlockSpec((1, S, HIDDEN), bmap),               # type emb
                pl.BlockSpec((1, HIDDEN), lambda b, l: (0, 0)),   # emb LN gamma
                pl.BlockSpec((1, HIDDEN), lambda b, l: (0, 0)),   # emb LN beta
                pl.BlockSpec((1, 1, S), bmap),                    # attention mask bias
                pl.BlockSpec((1, HIDDEN, 3 * HIDDEN), lmap),      # W_qkv
                pl.BlockSpec((1, 1, 3 * HIDDEN), lmap),           # b_qkv
                pl.BlockSpec((1, HIDDEN, HIDDEN), lmap),          # W_o
                pl.BlockSpec((1, 1, HIDDEN), lmap),               # b_o
                pl.BlockSpec((1, 1, HIDDEN), lmap),               # LN1 gamma
                pl.BlockSpec((1, 1, HIDDEN), lmap),               # LN1 beta
                pl.BlockSpec((1, HIDDEN, INTER), lmap),           # W_i
                pl.BlockSpec((1, 1, INTER), lmap),                # b_i
                pl.BlockSpec((1, INTER, HIDDEN), lmap),           # W_f
                pl.BlockSpec((1, 1, HIDDEN), lmap),               # b_f
                pl.BlockSpec((1, 1, HIDDEN), lmap),               # LN2 gamma
                pl.BlockSpec((1, 1, HIDDEN), lmap),               # LN2 beta
            ],
            out_specs=pl.BlockSpec((1, 1, HIDDEN), bmap),
            scratch_shapes=[pltpu.VMEM((S, HIDDEN), jnp.float32)],
        ),
        compiler_params=pltpu.CompilerParams(
            dimension_semantics=("parallel", "arbitrary"),
            vmem_limit_bytes=32 * 1024 * 1024,
        ),
    )(wemb, pemb, temb, emb_ln_g, emb_ln_b, mask_bias,
      p["w_qkv"], p["b_qkv"], p["w_o"], p["b_o"], p["ln1_g"], p["ln1_b"],
      p["w_i"], p["b_i"], p["w_f"], p["b_f"], p["ln2_g"], p["ln2_b"])
    return pooled3[:, 0, :]                                      # (B, H)


# ---------------- parameter construction (deterministic, synthetic) ----------------
def make_params(key):
    ks = iter(jax.random.split(key, 32))

    def w(shape, dtype, scale=0.02):
        return (scale * jax.random.normal(next(ks), shape, jnp.float32)).astype(dtype)

    return {
        "word_emb": w((VOCAB, HIDDEN), jnp.float32),
        "pos_emb": w((MAX_POS, HIDDEN), jnp.float32),
        "type_emb": w((TYPE_VOCAB, HIDDEN), jnp.float32),
        "emb_ln_g": jnp.ones((1, HIDDEN), jnp.float32),
        "emb_ln_b": jnp.zeros((1, HIDDEN), jnp.float32),
        # stacked per-layer weights (LAYERS, ...); matmul weights in bf16
        "w_qkv": w((LAYERS, HIDDEN, 3 * HIDDEN), jnp.bfloat16),   # [Wq|Wk|Wv]
        "b_qkv": jnp.zeros((LAYERS, 1, 3 * HIDDEN), jnp.float32),
        "w_o": w((LAYERS, HIDDEN, HIDDEN), jnp.bfloat16),
        "b_o": jnp.zeros((LAYERS, 1, HIDDEN), jnp.float32),
        "ln1_g": jnp.ones((LAYERS, 1, HIDDEN), jnp.float32),
        "ln1_b": jnp.zeros((LAYERS, 1, HIDDEN), jnp.float32),
        "w_i": w((LAYERS, HIDDEN, INTER), jnp.bfloat16),
        "b_i": jnp.zeros((LAYERS, 1, INTER), jnp.float32),
        "w_f": w((LAYERS, INTER, HIDDEN), jnp.bfloat16),
        "b_f": jnp.zeros((LAYERS, 1, HIDDEN), jnp.float32),
        "ln2_g": jnp.ones((LAYERS, 1, HIDDEN), jnp.float32),
        "ln2_b": jnp.zeros((LAYERS, 1, HIDDEN), jnp.float32),
    }


# ---------------- MixText forward ----------------
# TODO(synk): the x2/mix_layer branch (TMix interpolation + CUDA beta-scaled
# normal/uniform noise) is stochastic, cuda-only code with no deterministic
# Pallas equivalent; only the standard (x2=None) path is implemented.
@jax.jit
def mixtext_forward(params, input_ids, attention_mask, token_type_ids):
    # BertEmbeddings gathers in plain JAX (data-dependent gather); the sum +
    # LayerNorm and everything downstream runs inside the fused Pallas kernel.
    wemb = jnp.take(params["word_emb"], input_ids, axis=0)            # (B,S,H)
    temb = jnp.take(params["type_emb"], token_type_ids, axis=0)       # (B,S,H)
    pemb = params["pos_emb"][:S]                                      # (S,H)

    # extended attention mask: (1 - mask) * -10000, pre-shaped (B,1,S) so it
    # broadcasts over heads and query positions without per-head rebroadcast.
    mask_bias = ((1.0 - attention_mask.astype(jnp.float32)) * -10000.0)[:, None, :]

    # NOTE: BertPooler output is computed by BertModel4Mix but discarded by
    # MixText.forward, so it is not computed here.
    return mixtext_pallas(wemb, pemb, temb,
                          params["emb_ln_g"], params["emb_ln_b"],
                          mask_bias, params)                          # (B,H)


if __name__ == "__main__":
    key = jax.random.PRNGKey(0)
    pkey, ikey = jax.random.split(key)
    params = make_params(pkey)

    input_ids = jax.random.randint(ikey, (B, S), 0, VOCAB, dtype=jnp.int32)
    attention_mask = jnp.ones((B, S), jnp.int32)
    token_type_ids = jnp.zeros((B, S), jnp.int32)

    out = mixtext_forward(params, input_ids, attention_mask, token_type_ids)
    out = jax.block_until_ready(out)
    assert out.shape == (B, HIDDEN) and out.dtype == jnp.float32
    print("KERNEL_OK")
</pallas_src>

<mosaic_0001>
module attributes {stable_mosaic.version = 11 : i64} {
  func.func @mixtext_fused_kernel(%arg0: i32, %arg1: i32, %arg2: memref<1x8x128xf32, #tpu.memory_space<vmem>>, %arg3: memref<8x128xf32, #tpu.memory_space<vmem>>, %arg4: memref<1x8x128xf32, #tpu.memory_space<vmem>>, %arg5: memref<1x128xf32, #tpu.memory_space<vmem>>, %arg6: memref<1x128xf32, #tpu.memory_space<vmem>>, %arg7: memref<1x1x8xf32, #tpu.memory_space<vmem>>, %arg8: memref<1x128x384xbf16, #tpu.memory_space<vmem>>, %arg9: memref<1x1x384xf32, #tpu.memory_space<vmem>>, %arg10: memref<1x128x128xbf16, #tpu.memory_space<vmem>>, %arg11: memref<1x1x128xf32, #tpu.memory_space<vmem>>, %arg12: memref<1x1x128xf32, #tpu.memory_space<vmem>>, %arg13: memref<1x1x128xf32, #tpu.memory_space<vmem>>, %arg14: memref<1x128x256xbf16, #tpu.memory_space<vmem>>, %arg15: memref<1x1x256xf32, #tpu.memory_space<vmem>>, %arg16: memref<1x256x128xbf16, #tpu.memory_space<vmem>>, %arg17: memref<1x1x128xf32, #tpu.memory_space<vmem>>, %arg18: memref<1x1x128xf32, #tpu.memory_space<vmem>>, %arg19: memref<1x1x128xf32, #tpu.memory_space<vmem>>, %arg20: memref<1x1x128xf32, #tpu.memory_space<vmem>>, %arg21: memref<8x128xf32, #tpu.memory_space<vmem>>) attributes {dimension_semantics = [#tpu.dimension_semantics<parallel>, #tpu.dimension_semantics<arbitrary>], iteration_bounds = array<i64: 2, 2>, scalar_prefetch = 0 : i64, scratch_operands = 1 : i64, tpu.core_type = #tpu.core_type<tc>, window_params = [{transform_indices = @transform_0, window_bounds = array<i64: 1, 8, 128>}, {pipeline_mode = #tpu.pipeline_mode<synchronous>, transform_indices = @transform_1, window_bounds = array<i64: 8, 128>}, {transform_indices = @transform_2, window_bounds = array<i64: 1, 8, 128>}, {pipeline_mode = #tpu.pipeline_mode<synchronous>, transform_indices = @transform_3, window_bounds = array<i64: 1, 128>}, {pipeline_mode = #tpu.pipeline_mode<synchronous>, transform_indices = @transform_4, window_bounds = array<i64: 1, 128>}, {transform_indices = @transform_5, window_bounds = array<i64: 1, 1, 8>}, {transform_indices = @transform_6, window_bounds = array<i64: 1, 128, 384>}, {transform_indices = @transform_7, window_bounds = array<i64: 1, 1, 384>}, {transform_indices = @transform_8, window_bounds = array<i64: 1, 128, 128>}, {transform_indices = @transform_9, window_bounds = array<i64: 1, 1, 128>}, {transform_indices = @transform_10, window_bounds = array<i64: 1, 1, 128>}, {transform_indices = @transform_11, window_bounds = array<i64: 1, 1, 128>}, {transform_indices = @transform_12, window_bounds = array<i64: 1, 128, 256>}, {transform_indices = @transform_13, window_bounds = array<i64: 1, 1, 256>}, {transform_indices = @transform_14, window_bounds = array<i64: 1, 256, 128>}, {transform_indices = @transform_15, window_bounds = array<i64: 1, 1, 128>}, {transform_indices = @transform_16, window_bounds = array<i64: 1, 1, 128>}, {transform_indices = @transform_17, window_bounds = array<i64: 1, 1, 128>}, {transform_indices = @transform_18, window_bounds = array<i64: 1, 1, 128>}]} {
    %c0_i32 = arith.constant 0 : i32
    %0 = arith.cmpi eq, %arg1, %c0_i32 : i32
    %1 = arith.extui %0 : i1 to i32
    %c0_i32_0 = arith.constant 0 : i32
    %2 = arith.cmpi ne, %1, %c0_i32_0 : i32
    scf.if %2 {
      %c0_66 = arith.constant 0 : index
      %c0_67 = arith.constant 0 : index
      %c0_68 = arith.constant 0 : index
      %147 = vector.load %arg2[%c0_66, %c0_67, %c0_68] : memref<1x8x128xf32, #tpu.memory_space<vmem>>, vector<1x8x128xf32>
      %148 = vector.shape_cast %147 : vector<1x8x128xf32> to vector<8x128xf32>
      %c0_69 = arith.constant 0 : index
      %c0_70 = arith.constant 0 : index
      %149 = vector.load %arg3[%c0_69, %c0_70] : memref<8x128xf32, #tpu.memory_space<vmem>>, vector<8x128xf32>
      %150 = arith.addf %148, %149 : vector<8x128xf32>
      %c0_71 = arith.constant 0 : index
      %c0_72 = arith.constant 0 : index
      %c0_73 = arith.constant 0 : index
      %151 = vector.load %arg4[%c0_71, %c0_72, %c0_73] : memref<1x8x128xf32, #tpu.memory_space<vmem>>, vector<1x8x128xf32>
      %152 = vector.shape_cast %151 : vector<1x8x128xf32> to vector<8x128xf32>
      %153 = arith.addf %150, %152 : vector<8x128xf32>
      %c0_74 = arith.constant 0 : index
      %c0_75 = arith.constant 0 : index
      %154 = vector.load %arg5[%c0_74, %c0_75] : memref<1x128xf32, #tpu.memory_space<vmem>>, vector<1x128xf32>
      %c0_76 = arith.constant 0 : index
      %c0_77 = arith.constant 0 : index
      %155 = vector.load %arg6[%c0_76, %c0_77] : memref<1x128xf32, #tpu.memory_space<vmem>>, vector<1x128xf32>
      %cst_78 = arith.constant dense<0.000000e+00> : vector<8xf32>
      %156 = vector.multi_reduction <add>, %153, %cst_78 [1] : vector<8x128xf32> to vector<8xf32>
      %157 = vector.shape_cast %156 : vector<8xf32> to vector<8x1xf32>
      %cst_79 = arith.constant 1.280000e+02 : f32
      %158 = vector.broadcast %cst_79 : f32 to vector<8x1xf32>
      %159 = arith.divf %157, %158 : vector<8x1xf32>
      %160 = vector.broadcast %159 : vector<8x1xf32> to vector<8x128xf32>
      %161 = arith.subf %153, %160 : vector<8x128xf32>
      %162 = arith.mulf %161, %161 : vector<8x128xf32>
      %cst_80 = arith.constant dense<0.000000e+00> : vector<8xf32>
      %163 = vector.multi_reduction <add>, %162, %cst_80 [1] : vector<8x128xf32> to vector<8xf32>
      %164 = vector.shape_cast %163 : vector<8xf32> to vector<8x1xf32>
      %cst_81 = arith.constant 1.280000e+02 : f32
      %165 = vector.broadcast %cst_81 : f32 to vector<8x1xf32>
      %166 = arith.divf %164, %165 : vector<8x1xf32>
      %167 = vector.broadcast %159 : vector<8x1xf32> to vector<8x128xf32>
      %168 = arith.subf %153, %167 : vector<8x128xf32>
      %cst_82 = arith.constant 9.99999996E-13 : f32
      %169 = vector.broadcast %cst_82 : f32 to vector<8x1xf32>
      %170 = arith.addf %166, %169 : vector<8x1xf32>
      %171 = math.rsqrt %170 : vector<8x1xf32>
      %172 = vector.broadcast %171 : vector<8x1xf32> to vector<8x128xf32>
      %173 = arith.mulf %168, %172 : vector<8x128xf32>
      %174 = vector.broadcast %154 : vector<1x128xf32> to vector<8x128xf32>
      %175 = arith.mulf %173, %174 : vector<8x128xf32>
      %176 = vector.broadcast %155 : vector<1x128xf32> to vector<8x128xf32>
      %177 = arith.addf %175, %176 : vector<8x128xf32>
      %c0_83 = arith.constant 0 : index
      %c0_84 = arith.constant 0 : index
      %178 = vector.load %arg21[%c0_83, %c0_84] : memref<8x128xf32, #tpu.memory_space<vmem>>, vector<8x128xf32>
      tpu.vector_store %arg21[%c0_83, %c0_84], %177 {strides = array<i32>} : memref<8x128xf32, #tpu.memory_space<vmem>>, vector<8x128xf32>,
    } else {
    }
    %c0 = arith.constant 0 : index
    %c0_1 = arith.constant 0 : index
    %3 = vector.load %arg21[%c0, %c0_1] : memref<8x128xf32, #tpu.memory_space<vmem>>, vector<8x128xf32>
    %4 = arith.truncf %3 : vector<8x128xf32> to vector<8x128xbf16>
    %c0_2 = arith.constant 0 : index
    %c0_3 = arith.constant 0 : index
    %c0_4 = arith.constant 0 : index
    %5 = vector.load %arg8[%c0_2, %c0_3, %c0_4] : memref<1x128x384xbf16, #tpu.memory_space<vmem>>, vector<1x128x384xbf16>
    %6 = vector.shape_cast %5 : vector<1x128x384xbf16> to vector<128x384xbf16>
    %cst = arith.constant dense<0.000000e+00> : vector<8x384xf32>
    %7 = tpu.matmul %4, %6, %cst {dimension_numbers = #tpu.dot_dimension_numbers<[1], [0], [0], [1], [0, 0, 1, 1], [], []>} : vector<8x128xbf16>, vector<128x384xbf16>, vector<8x384xf32> -> vector<8x384xf32>
    %c0_5 = arith.constant 0 : index
    %c0_6 = arith.constant 0 : index
    %c0_7 = arith.constant 0 : index
    %8 = vector.load %arg9[%c0_5, %c0_6, %c0_7] : memref<1x1x384xf32, #tpu.memory_space<vmem>>, vector<1x1x384xf32>
    %9 = vector.shape_cast %8 : vector<1x1x384xf32> to vector<1x384xf32>
    %10 = vector.broadcast %9 : vector<1x384xf32> to vector<8x384xf32>
    %11 = arith.addf %7, %10 : vector<8x384xf32>
    %12 = vector.extract_strided_slice %11 {offsets = [0, 0], sizes = [8, 128], strides = [1, 1]} : vector<8x384xf32> to vector<8x128xf32>
    %13 = vector.extract_strided_slice %11 {offsets = [0, 128], sizes = [8, 128], strides = [1, 1]} : vector<8x384xf32> to vector<8x128xf32>
    %14 = vector.extract_strided_slice %11 {offsets = [0, 256], sizes = [8, 128], strides = [1, 1]} : vector<8x384xf32> to vector<8x128xf32>
    %15 = vector.extract_strided_slice %12 {offsets = [0, 0], sizes = [8, 64], strides = [1, 1]} : vector<8x128xf32> to vector<8x64xf32>
    %16 = vector.extract_strided_slice %12 {offsets = [0, 64], sizes = [8, 64], strides = [1, 1]} : vector<8x128xf32> to vector<8x64xf32>
    %17 = vector.shape_cast %15 : vector<8x64xf32> to vector<1x8x64xf32>
    %18 = vector.shape_cast %16 : vector<8x64xf32> to vector<1x8x64xf32>
    %19 = tpu.concatenate %17, %18 in 0 : vector<1x8x64xf32>, vector<1x8x64xf32> -> vector<2x8x64xf32>
    %20 = vector.extract_strided_slice %13 {offsets = [0, 0], sizes = [8, 64], strides = [1, 1]} : vector<8x128xf32> to vector<8x64xf32>
    %21 = vector.extract_strided_slice %13 {offsets = [0, 64], sizes = [8, 64], strides = [1, 1]} : vector<8x128xf32> to vector<8x64xf32>
    %22 = vector.shape_cast %20 : vector<8x64xf32> to vector<1x8x64xf32>
    %23 = vector.shape_cast %21 : vector<8x64xf32> to vector<1x8x64xf32>
    %24 = tpu.concatenate %22, %23 in 0 : vector<1x8x64xf32>, vector<1x8x64xf32> -> vector<2x8x64xf32>
    %25 = vector.extract_strided_slice %14 {offsets = [0, 0], sizes = [8, 64], strides = [1, 1]} : vector<8x128xf32> to vector<8x64xf32>
    %26 = vector.extract_strided_slice %14 {offsets = [0, 64], sizes = [8, 64], strides = [1, 1]} : vector<8x128xf32> to vector<8x64xf32>
    %27 = vector.shape_cast %25 : vector<8x64xf32> to vector<1x8x64xf32>
    %28 = vector.shape_cast %26 : vector<8x64xf32> to vector<1x8x64xf32>
    %29 = tpu.concatenate %27, %28 in 0 : vector<1x8x64xf32>, vector<1x8x64xf32> -> vector<2x8x64xf32>
    %c0_8 = arith.constant 0 : index
    %c0_9 = arith.constant 0 : index
    %c0_10 = arith.constant 0 : index
    %30 = vector.load %arg7[%c0_8, %c0_9, %c0_10] : memref<1x1x8xf32, #tpu.memory_space<vmem>>, vector<1x1x8xf32>
    "tpu.trace_start"() <{level = 10 : i32, message = "hqd,hkd->hqk"}> : () -> ()
    %cst_11 = arith.constant dense<0.000000e+00> : vector<2x8x8xf32>
    %31 = tpu.matmul %19, %24, %cst_11 {dimension_numbers = #tpu.dot_dimension_numbers<[2], [2], [1], [1], [0, 0, 0, 1, 1, 1], [0], [0]>} : vector<2x8x64xf32>, vector<2x8x64xf32>, vector<2x8x8xf32> -> vector<2x8x8xf32>
    "tpu.trace_stop"() : () -> ()
    %cst_12 = arith.constant 1.250000e-01 : f32
    %32 = vector.broadcast %cst_12 : f32 to vector<2x8x8xf32>
    %33 = arith.mulf %31, %32 : vector<2x8x8xf32>
    %34 = vector.broadcast %30 : vector<1x1x8xf32> to vector<2x8x8xf32>
    %35 = arith.addf %33, %34 : vector<2x8x8xf32>
    %cst_13 = arith.constant dense<0xFF800000> : vector<2x8xf32>
    %36 = vector.multi_reduction <maximumf>, %35, %cst_13 [2] : vector<2x8x8xf32> to vector<2x8xf32>
    %37 = vector.shape_cast %36 : vector<2x8xf32> to vector<2x8x1xf32>
    %38 = vector.broadcast %37 : vector<2x8x1xf32> to vector<2x8x8xf32>
    %39 = arith.subf %35, %38 : vector<2x8x8xf32>
    %40 = math.exp %39 : vector<2x8x8xf32>
    %cst_14 = arith.constant dense<0.000000e+00> : vector<2x8xf32>
    %41 = vector.multi_reduction <add>, %40, %cst_14 [2] : vector<2x8x8xf32> to vector<2x8xf32>
    %42 = vector.shape_cast %41 : vector<2x8xf32> to vector<2x8x1xf32>
    %43 = tpu.reciprocal %42 {approx = true} : vector<2x8x1xf32> -> vector<2x8x1xf32>
    %44 = vector.broadcast %43 : vector<2x8x1xf32> to vector<2x8x8xf32>
    %45 = arith.mulf %40, %44 : vector<2x8x8xf32>
    "tpu.trace_start"() <{level = 10 : i32, message = "hqk,hkd->hqd"}> : () -> ()
    %cst_15 = arith.constant dense<0.000000e+00> : vector<2x8x64xf32>
    %46 = tpu.matmul %45, %29, %cst_15 {dimension_numbers = #tpu.dot_dimension_numbers<[2], [1], [1], [2], [0, 0, 0, 1, 1, 2], [0], [0]>} : vector<2x8x8xf32>, vector<2x8x64xf32>, vector<2x8x64xf32> -> vector<2x8x64xf32>
    "tpu.trace_stop"() : () -> ()
    %47 = vector.extract_strided_slice %46 {offsets = [0, 0, 0], sizes = [1, 8, 64], strides = [1, 1, 1]} : vector<2x8x64xf32> to vector<1x8x64xf32>
    %48 = vector.shape_cast %47 : vector<1x8x64xf32> to vector<8x64xf32>
    %49 = vector.extract_strided_slice %46 {offsets = [1, 0, 0], sizes = [1, 8, 64], strides = [1, 1, 1]} : vector<2x8x64xf32> to vector<1x8x64xf32>
    %50 = vector.shape_cast %49 : vector<1x8x64xf32> to vector<8x64xf32>
    %51 = tpu.concatenate %48, %50 in 1 : vector<8x64xf32>, vector<8x64xf32> -> vector<8x128xf32>
    %52 = arith.truncf %51 : vector<8x128xf32> to vector<8x128xbf16>
    %c0_16 = arith.constant 0 : index
    %c0_17 = arith.constant 0 : index
    %c0_18 = arith.constant 0 : index
    %53 = vector.load %arg10[%c0_16, %c0_17, %c0_18] : memref<1x128x128xbf16, #tpu.memory_space<vmem>>, vector<1x128x128xbf16>
    %54 = vector.shape_cast %53 : vector<1x128x128xbf16> to vector<128x128xbf16>
    %cst_19 = arith.constant dense<0.000000e+00> : vector<8x128xf32>
    %55 = tpu.matmul %52, %54, %cst_19 {dimension_numbers = #tpu.dot_dimension_numbers<[1], [0], [0], [1], [0, 0, 1, 1], [], []>} : vector<8x128xbf16>, vector<128x128xbf16>, vector<8x128xf32> -> vector<8x128xf32>
    %c0_20 = arith.constant 0 : index
    %c0_21 = arith.constant 0 : index
    %c0_22 = arith.constant 0 : index
    %56 = vector.load %arg11[%c0_20, %c0_21, %c0_22] : memref<1x1x128xf32, #tpu.memory_space<vmem>>, vector<1x1x128xf32>
    %57 = vector.shape_cast %56 : vector<1x1x128xf32> to vector<1x128xf32>
    %58 = vector.broadcast %57 : vector<1x128xf32> to vector<8x128xf32>
    %59 = arith.addf %55, %58 : vector<8x128xf32>
    %60 = arith.addf %59, %3 : vector<8x128xf32>
    %c0_23 = arith.constant 0 : index
    %c0_24 = arith.constant 0 : index
    %c0_25 = arith.constant 0 : index
    %61 = vector.load %arg12[%c0_23, %c0_24, %c0_25] : memref<1x1x128xf32, #tpu.memory_space<vmem>>, vector<1x1x128xf32>
    %62 = vector.shape_cast %61 : vector<1x1x128xf32> to vector<1x128xf32>
    %c0_26 = arith.constant 0 : index
    %c0_27 = arith.constant 0 : index
    %c0_28 = arith.constant 0 : index
    %63 = vector.load %arg13[%c0_26, %c0_27, %c0_28] : memref<1x1x128xf32, #tpu.memory_space<vmem>>, vector<1x1x128xf32>
    %64 = vector.shape_cast %63 : vector<1x1x128xf32> to vector<1x128xf32>
    %cst_29 = arith.constant dense<0.000000e+00> : vector<8xf32>
    %65 = vector.multi_reduction <add>, %60, %cst_29 [1] : vector<8x128xf32> to vector<8xf32>
    %66 = vector.shape_cast %65 : vector<8xf32> to vector<8x1xf32>
    %cst_30 = arith.constant 1.280000e+02 : f32
    %67 = vector.broadcast %cst_30 : f32 to vector<8x1xf32>
    %68 = arith.divf %66, %67 : vector<8x1xf32>
    %69 = vector.broadcast %68 : vector<8x1xf32> to vector<8x128xf32>
    %70 = arith.subf %60, %69 : vector<8x128xf32>
    %71 = arith.mulf %70, %70 : vector<8x128xf32>
    %cst_31 = arith.constant dense<0.000000e+00> : vector<8xf32>
    %72 = vector.multi_reduction <add>, %71, %cst_31 [1] : vector<8x128xf32> to vector<8xf32>
    %73 = vector.shape_cast %72 : vector<8xf32> to vector<8x1xf32>
    %cst_32 = arith.constant 1.280000e+02 : f32
    %74 = vector.broadcast %cst_32 : f32 to vector<8x1xf32>
    %75 = arith.divf %73, %74 : vector<8x1xf32>
    %76 = vector.broadcast %68 : vector<8x1xf32> to vector<8x128xf32>
    %77 = arith.subf %60, %76 : vector<8x128xf32>
    %cst_33 = arith.constant 9.99999996E-13 : f32
    %78 = vector.broadcast %cst_33 : f32 to vector<8x1xf32>
    %79 = arith.addf %75, %78 : vector<8x1xf32>
    %80 = math.rsqrt %79 : vector<8x1xf32>
    %81 = vector.broadcast %80 : vector<8x1xf32> to vector<8x128xf32>
    %82 = arith.mulf %77, %81 : vector<8x128xf32>
    %83 = vector.broadcast %62 : vector<1x128xf32> to vector<8x128xf32>
    %84 = arith.mulf %82, %83 : vector<8x128xf32>
    %85 = vector.broadcast %64 : vector<1x128xf32> to vector<8x128xf32>
    %86 = arith.addf %84, %85 : vector<8x128xf32>
    %87 = arith.truncf %86 : vector<8x128xf32> to vector<8x128xbf16>
    %c0_34 = arith.constant 0 : index
    %c0_35 = arith.constant 0 : index
    %c0_36 = arith.constant 0 : index
    %88 = vector.load %arg14[%c0_34, %c0_35, %c0_36] : memref<1x128x256xbf16, #tpu.memory_space<vmem>>, vector<1x128x256xbf16>
    %89 = vector.shape_cast %88 : vector<1x128x256xbf16> to vector<128x256xbf16>
    %cst_37 = arith.constant dense<0.000000e+00> : vector<8x256xf32>
    %90 = tpu.matmul %87, %89, %cst_37 {dimension_numbers = #tpu.dot_dimension_numbers<[1], [0], [0], [1], [0, 0, 1, 1], [], []>} : vector<8x128xbf16>, vector<128x256xbf16>, vector<8x256xf32> -> vector<8x256xf32>
    %c0_38 = arith.constant 0 : index
    %c0_39 = arith.constant 0 : index
    %c0_40 = arith.constant 0 : index
    %91 = vector.load %arg15[%c0_38, %c0_39, %c0_40] : memref<1x1x256xf32, #tpu.memory_space<vmem>>, vector<1x1x256xf32>
    %92 = vector.shape_cast %91 : vector<1x1x256xf32> to vector<1x256xf32>
    %93 = vector.broadcast %92 : vector<1x256xf32> to vector<8x256xf32>
    %94 = arith.addf %90, %93 : vector<8x256xf32>
    %cst_41 = arith.constant 5.000000e-01 : f32
    %95 = vector.broadcast %cst_41 : f32 to vector<8x256xf32>
    %96 = arith.mulf %95, %94 : vector<8x256xf32>
    %cst_42 = arith.constant 4.471500e-02 : f32
    %97 = vector.broadcast %cst_42 : f32 to vector<8x256xf32>
    %98 = arith.mulf %97, %94 : vector<8x256xf32>
    %99 = arith.mulf %98, %94 : vector<8x256xf32>
    %100 = arith.mulf %99, %94 : vector<8x256xf32>
    %101 = arith.addf %94, %100 : vector<8x256xf32>
    %cst_43 = arith.constant 0.797884583 : f32
    %102 = vector.broadcast %cst_43 : f32 to vector<8x256xf32>
    %103 = arith.mulf %102, %101 : vector<8x256xf32>
    %104 = math.tanh %103 : vector<8x256xf32>
    %cst_44 = arith.constant 1.000000e+00 : f32
    %105 = vector.broadcast %cst_44 : f32 to vector<8x256xf32>
    %106 = arith.addf %105, %104 : vector<8x256xf32>
    %107 = arith.mulf %96, %106 : vector<8x256xf32>
    %108 = arith.truncf %107 : vector<8x256xf32> to vector<8x256xbf16>
    %c0_45 = arith.constant 0 : index
    %c0_46 = arith.constant 0 : index
    %c0_47 = arith.constant 0 : index
    %109 = vector.load %arg16[%c0_45, %c0_46, %c0_47] : memref<1x256x128xbf16, #tpu.memory_space<vmem>>, vector<1x256x128xbf16>
    %110 = vector.shape_cast %109 : vector<1x256x128xbf16> to vector<256x128xbf16>
    %cst_48 = arith.constant dense<0.000000e+00> : vector<8x128xf32>
    %111 = tpu.matmul %108, %110, %cst_48 {dimension_numbers = #tpu.dot_dimension_numbers<[1], [0], [0], [1], [0, 0, 1, 1], [], []>} : vector<8x256xbf16>, vector<256x128xbf16>, vector<8x128xf32> -> vector<8x128xf32>
    %c0_49 = arith.constant 0 : index
    %c0_50 = arith.constant 0 : index
    %c0_51 = arith.constant 0 : index
    %112 = vector.load %arg17[%c0_49, %c0_50, %c0_51] : memref<1x1x128xf32, #tpu.memory_space<vmem>>, vector<1x1x128xf32>
    %113 = vector.shape_cast %112 : vector<1x1x128xf32> to vector<1x128xf32>
    %114 = vector.broadcast %113 : vector<1x128xf32> to vector<8x128xf32>
    %115 = arith.addf %111, %114 : vector<8x128xf32>
    %116 = arith.addf %115, %86 : vector<8x128xf32>
    %c0_52 = arith.constant 0 : index
    %c0_53 = arith.constant 0 : index
    %c0_54 = arith.constant 0 : index
    %117 = vector.load %arg18[%c0_52, %c0_53, %c0_54] : memref<1x1x128xf32, #tpu.memory_space<vmem>>, vector<1x1x128xf32>
    %118 = vector.shape_cast %117 : vector<1x1x128xf32> to vector<1x128xf32>
    %c0_55 = arith.constant 0 : index
    %c0_56 = arith.constant 0 : index
    %c0_57 = arith.constant 0 : index
    %119 = vector.load %arg19[%c0_55, %c0_56, %c0_57] : memref<1x1x128xf32, #tpu.memory_space<vmem>>, vector<1x1x128xf32>
    %120 = vector.shape_cast %119 : vector<1x1x128xf32> to vector<1x128xf32>
    %cst_58 = arith.constant dense<0.000000e+00> : vector<8xf32>
    %121 = vector.multi_reduction <add>, %116, %cst_58 [1] : vector<8x128xf32> to vector<8xf32>
    %122 = vector.shape_cast %121 : vector<8xf32> to vector<8x1xf32>
    %cst_59 = arith.constant 1.280000e+02 : f32
    %123 = vector.broadcast %cst_59 : f32 to vector<8x1xf32>
    %124 = arith.divf %122, %123 : vector<8x1xf32>
    %125 = vector.broadcast %124 : vector<8x1xf32> to vector<8x128xf32>
    %126 = arith.subf %116, %125 : vector<8x128xf32>
    %127 = arith.mulf %126, %126 : vector<8x128xf32>
    %cst_60 = arith.constant dense<0.000000e+00> : vector<8xf32>
    %128 = vector.multi_reduction <add>, %127, %cst_60 [1] : vector<8x128xf32> to vector<8xf32>
    %129 = vector.shape_cast %128 : vector<8xf32> to vector<8x1xf32>
    %cst_61 = arith.constant 1.280000e+02 : f32
    %130 = vector.broadcast %cst_61 : f32 to vector<8x1xf32>
    %131 = arith.divf %129, %130 : vector<8x1xf32>
    %132 = vector.broadcast %124 : vector<8x1xf32> to vector<8x128xf32>
    %133 = arith.subf %116, %132 : vector<8x128xf32>
    %cst_62 = arith.constant 9.99999996E-13 : f32
    %134 = vector.broadcast %cst_62 : f32 to vector<8x1xf32>
    %135 = arith.addf %131, %134 : vector<8x1xf32>
    %136 = math.rsqrt %135 : vector<8x1xf32>
    %137 = vector.broadcast %136 : vector<8x1xf32> to vector<8x128xf32>
    %138 = arith.mulf %133, %137 : vector<8x128xf32>
    %139 = vector.broadcast %118 : vector<1x128xf32> to vector<8x128xf32>
    %140 = arith.mulf %138, %139 : vector<8x128xf32>
    %141 = vector.broadcast %120 : vector<1x128xf32> to vector<8x128xf32>
    %142 = arith.addf %140, %141 : vector<8x128xf32>
    %c0_63 = arith.constant 0 : index
    %c0_64 = arith.constant 0 : index
    %143 = vector.load %arg21[%c0_63, %c0_64] : memref<8x128xf32, #tpu.memory_space<vmem>>, vector<8x128xf32>
    tpu.vector_store %arg21[%c0_63, %c0_64], %142 {strides = array<i32>} : memref<8x128xf32, #tpu.memory_space<vmem>>, vector<8x128xf32>,
    %c1_i32 = arith.constant 1 : i32
    %144 = arith.cmpi eq, %arg1, %c1_i32 : i32
    %145 = arith.extui %144 : i1 to i32
    %c0_i32_65 = arith.constant 0 : i32
    %146 = arith.cmpi ne, %145, %c0_i32_65 : i32
    scf.if %146 {
      %cst_66 = arith.constant dense<0.000000e+00> : vector<128xf32>
      %147 = vector.multi_reduction <add>, %142, %cst_66 [0] : vector<8x128xf32> to vector<128xf32>
      %148 = vector.shape_cast %147 : vector<128xf32> to vector<1x128xf32>
      %cst_67 = arith.constant 8.000000e+00 : f32
      %149 = vector.broadcast %cst_67 : f32 to vector<1x128xf32>
      %150 = arith.divf %148, %149 : vector<1x128xf32>
      %c0_68 = arith.constant 0 : index
      %c0_69 = arith.constant 0 : index
      %c0_70 = arith.constant 0 : index
      %151 = vector.load %arg20[%c0_68, %c0_69, %c0_70] : memref<1x1x128xf32, #tpu.memory_space<vmem>>, vector<1x1x128xf32>
      %152 = vector.shape_cast %151 : vector<1x1x128xf32> to vector<1x128xf32>
      %153 = vector.shape_cast %150 : vector<1x128xf32> to vector<1x1x128xf32>
      tpu.vector_store %arg20[%c0_68, %c0_69, %c0_70], %153 {strides = array<i32>} : memref<1x1x128xf32, #tpu.memory_space<vmem>>, vector<1x1x128xf32>,
    } else {
    }
    return
  }
  func.func @transform_0(%arg0: i32, %arg1: i32) -> (i32, i32, i32) {
    %c0_i32 = arith.constant 0 : i32
    %c0_i32_0 = arith.constant 0 : i32
    %c0_i32_1 = arith.constant 0 : i32
    return %arg0, %c0_i32, %c0_i32_0 : i32, i32, i32
  }
  func.func @transform_1(%arg0: i32, %arg1: i32) -> (i32, i32) {
    %c0_i32 = arith.constant 0 : i32
    %c0_i32_0 = arith.constant 0 : i32
    %c0_i32_1 = arith.constant 0 : i32
    return %c0_i32, %c0_i32_0 : i32, i32
  }
  func.func @transform_2(%arg0: i32, %arg1: i32) -> (i32, i32, i32) {
    %c0_i32 = arith.constant 0 : i32
    %c0_i32_0 = arith.constant 0 : i32
    %c0_i32_1 = arith.constant 0 : i32
    return %arg0, %c0_i32, %c0_i32_0 : i32, i32, i32
  }
  func.func @transform_3(%arg0: i32, %arg1: i32) -> (i32, i32) {
    %c0_i32 = arith.constant 0 : i32
    %c0_i32_0 = arith.constant 0 : i32
    %c0_i32_1 = arith.constant 0 : i32
    return %c0_i32, %c0_i32_0 : i32, i32
  }
  func.func @transform_4(%arg0: i32, %arg1: i32) -> (i32, i32) {
    %c0_i32 = arith.constant 0 : i32
    %c0_i32_0 = arith.constant 0 : i32
    %c0_i32_1 = arith.constant 0 : i32
    return %c0_i32, %c0_i32_0 : i32, i32
  }
  func.func @transform_5(%arg0: i32, %arg1: i32) -> (i32, i32, i32) {
    %c0_i32 = arith.constant 0 : i32
    %c0_i32_0 = arith.constant 0 : i32
    %c0_i32_1 = arith.constant 0 : i32
    return %arg0, %c0_i32, %c0_i32_0 : i32, i32, i32
  }
  func.func @transform_6(%arg0: i32, %arg1: i32) -> (i32, i32, i32) {
    %c0_i32 = arith.constant 0 : i32
    %c0_i32_0 = arith.constant 0 : i32
    %c0_i32_1 = arith.constant 0 : i32
    return %arg1, %c0_i32, %c0_i32_0 : i32, i32, i32
  }
  func.func @transform_7(%arg0: i32, %arg1: i32) -> (i32, i32, i32) {
    %c0_i32 = arith.constant 0 : i32
    %c0_i32_0 = arith.constant 0 : i32
    %c0_i32_1 = arith.constant 0 : i32
    return %arg1, %c0_i32, %c0_i32_0 : i32, i32, i32
  }
  func.func @transform_8(%arg0: i32, %arg1: i32) -> (i32, i32, i32) {
    %c0_i32 = arith.constant 0 : i32
    %c0_i32_0 = arith.constant 0 : i32
    %c0_i32_1 = arith.constant 0 : i32
    return %arg1, %c0_i32, %c0_i32_0 : i32, i32, i32
  }
  func.func @transform_9(%arg0: i32, %arg1: i32) -> (i32, i32, i32) {
    %c0_i32 = arith.constant 0 : i32
    %c0_i32_0 = arith.constant 0 : i32
    %c0_i32_1 = arith.constant 0 : i32
    return %arg1, %c0_i32, %c0_i32_0 : i32, i32, i32
  }
  func.func @transform_10(%arg0: i32, %arg1: i32) -> (i32, i32, i32) {
    %c0_i32 = arith.constant 0 : i32
    %c0_i32_0 = arith.constant 0 : i32
    %c0_i32_1 = arith.constant 0 : i32
    return %arg1, %c0_i32, %c0_i32_0 : i32, i32, i32
  }
  func.func @transform_11(%arg0: i32, %arg1: i32) -> (i32, i32, i32) {
    %c0_i32 = arith.constant 0 : i32
    %c0_i32_0 = arith.constant 0 : i32
    %c0_i32_1 = arith.constant 0 : i32
    return %arg1, %c0_i32, %c0_i32_0 : i32, i32, i32
  }
  func.func @transform_12(%arg0: i32, %arg1: i32) -> (i32, i32, i32) {
    %c0_i32 = arith.constant 0 : i32
    %c0_i32_0 = arith.constant 0 : i32
    %c0_i32_1 = arith.constant 0 : i32
    return %arg1, %c0_i32, %c0_i32_0 : i32, i32, i32
  }
  func.func @transform_13(%arg0: i32, %arg1: i32) -> (i32, i32, i32) {
    %c0_i32 = arith.constant 0 : i32
    %c0_i32_0 = arith.constant 0 : i32
    %c0_i32_1 = arith.constant 0 : i32
    return %arg1, %c0_i32, %c0_i32_0 : i32, i32, i32
  }
  func.func @transform_14(%arg0: i32, %arg1: i32) -> (i32, i32, i32) {
    %c0_i32 = arith.constant 0 : i32
    %c0_i32_0 = arith.constant 0 : i32
    %c0_i32_1 = arith.constant 0 : i32
    return %arg1, %c0_i32, %c0_i32_0 : i32, i32, i32
  }
  func.func @transform_15(%arg0: i32, %arg1: i32) -> (i32, i32, i32) {
    %c0_i32 = arith.constant 0 : i32
    %c0_i32_0 = arith.constant 0 : i32
    %c0_i32_1 = arith.constant 0 : i32
    return %arg1, %c0_i32, %c0_i32_0 : i32, i32, i32
  }
  func.func @transform_16(%arg0: i32, %arg1: i32) -> (i32, i32, i32) {
    %c0_i32 = arith.constant 0 : i32
    %c0_i32_0 = arith.constant 0 : i32
    %c0_i32_1 = arith.constant 0 : i32
    return %arg1, %c0_i32, %c0_i32_0 : i32, i32, i32
  }
  func.func @transform_17(%arg0: i32, %arg1: i32) -> (i32, i32, i32) {
    %c0_i32 = arith.constant 0 : i32
    %c0_i32_0 = arith.constant 0 : i32
    %c0_i32_1 = arith.constant 0 : i32
    return %arg1, %c0_i32, %c0_i32_0 : i32, i32, i32
  }
  func.func @transform_18(%arg0: i32, %arg1: i32) -> (i32, i32, i32) {
    %c0_i32 = arith.constant 0 : i32
    %c0_i32_0 = arith.constant 0 : i32
    %c0_i32_1 = arith.constant 0 : i32
    return %arg0, %c0_i32, %c0_i32_0 : i32, i32, i32
  }
}

</mosaic_0001>

<llo_original>
// kernel: mixtext_forward.1
$region0: #{mixtext_forward.1}
  #allocation0 [shape = 'u32[]', space=smem, size = 0x4, offset = 0x4, fixed_abs, tag = 'smem constant byte address 0x4 - core index']
  #allocation1 [shape = 'u32[144,128]{1,0:T(1,128)}', space=vmem, size = 0x12000, scoped, tag = 'internal scratch']
  #allocation2 [shape = 'f32[8,128]{1,0:T(8,128)}', space=vmem, size = 0x1000, scoped, tag = 'scratch operand']
  %s0 = inlined_call_operand.vmem [shape: f32[2,8,128], index: 0, kind: input, shape index: {}]
  %s1 = inlined_call_operand.vmem [shape: f32[8,128], index: 1, kind: input, shape index: {}]
  %s2 = inlined_call_operand.vmem [shape: f32[2,8,128], index: 2, kind: input, shape index: {}]
  %s3 = inlined_call_operand.vmem [shape: f32[1,128], index: 3, kind: input, shape index: {}]
  %s4 = inlined_call_operand.vmem [shape: f32[1,128], index: 4, kind: input, shape index: {}]
  %s5 = inlined_call_operand.vmem [shape: f32[2,1,8], index: 5, kind: input, shape index: {}]
  %s6 = inlined_call_operand.hbm [shape: bf16[2,128,384], index: 6, kind: input, shape index: {}]
  %s7 = inlined_call_operand.vmem [shape: f32[2,1,384], index: 7, kind: input, shape index: {}]
  %s8 = inlined_call_operand.vmem [shape: bf16[2,128,128], index: 8, kind: input, shape index: {}]
  %s9 = inlined_call_operand.vmem [shape: f32[2,1,128], index: 9, kind: input, shape index: {}]
  %s10 = inlined_call_operand.vmem [shape: f32[2,1,128], index: 10, kind: input, shape index: {}]
  %s11 = inlined_call_operand.vmem [shape: f32[2,1,128], index: 11, kind: input, shape index: {}]
  %s12 = inlined_call_operand.hbm [shape: bf16[2,128,256], index: 12, kind: input, shape index: {}]
  %s13 = inlined_call_operand.vmem [shape: f32[2,1,256], index: 13, kind: input, shape index: {}]
  %s14 = inlined_call_operand.hbm [shape: bf16[2,256,128], index: 14, kind: input, shape index: {}]
  %s15 = inlined_call_operand.vmem [shape: f32[2,1,128], index: 15, kind: input, shape index: {}]
  %s16 = inlined_call_operand.vmem [shape: f32[2,1,128], index: 16, kind: input, shape index: {}]
  %s17 = inlined_call_operand.vmem [shape: f32[2,1,128], index: 17, kind: input, shape index: {}]
  %s18 = inlined_call_operand.hbm [shape: f32[2,1,128], index: 18, kind: output, shape index: {}]
  %s19 = sld [smem:[#allocation0]]
  $region125: #{mixtext_forward.1} parent=0
    _
  %s21 = ssub.s32 1, %s19
  %s22 = scalar_select 0, %s21, %s19
  $region1: #{mixtext_forward.1} parent=0
    #allocation3 [shape = 'u8[196608]{0}', space=vmem, size = 0x30000, scoped, tag = 'input window, operand 6']
    #allocation4 [shape = 's32[2]{0}', space=sflag, size = 0x8, scoped, tag = 'scoped memory for mixtext_forward.1']
    #allocation5 [shape = 's32[2]{0}', space=sflag, size = 0x8, scoped, tag = 'scoped memory for mixtext_forward.1']
    #allocation6 [shape = 'u8[131072]{0}', space=vmem, size = 0x20000, scoped, tag = 'input window, operand 12']
    #allocation7 [shape = 's32[2]{0}', space=sflag, size = 0x8, scoped, tag = 'scoped memory for mixtext_forward.1']
    #allocation8 [shape = 'u8[131072]{0}', space=vmem, size = 0x20000, scoped, tag = 'input window, operand 14']
    #allocation9 [shape = 'u8[1024]{0}', space=vmem, size = 0x400, scoped, tag = 'output window, operand 0']
    %23 = vsyncpa [#allocation4], 0
    %s24 = scalar_lea.sflag [#allocation4], 1
    %25 = vsyncpa %s24, 0
    %26 = vsyncpa [#allocation7], 0
    %s27 = scalar_lea.sflag [#allocation7], 1
    %28 = vsyncpa %s27, 0
    %29 = vsyncpa [#allocation5], 0
    %s30 = scalar_lea.sflag [#allocation5], 1
    %31 = vsyncpa %s30, 0
    loop: start=0, step=1, limit=6
    $region2: #{mixtext_forward.1} parent=1 // loop_pre_header
      _
    $region3: #{mixtext_forward.1} parent=1 // loop_header
      %s33 = sphi 0, %s37
      %p34 = scmp.ge.s32.totalorder %s33, 6
      %s40 = sphi 0, %s52
      %s41 = sphi 0, %s48
      %s42 = sphi 0, %s40
      %s43 = sphi 0, %s41
      %s44 = sphi 0, %s42
      %s45 = sphi 0, %s43
      %s55 = sphi 0, %s57
      %s58 = sphi 0, %s55
      %s59 = sphi 0, %s58
      %s75 = sphi 0, %s59
      %s79 = sphi 0, %s79
      %s81 = sphi 0, %s79
      %s82 = sphi 0, %s81
      %s96 = sphi 0, %s82
      %s102 = sphi 0, %s104
      %s105 = sphi 0, %s102
      %s106 = sphi 0, %s105
      %s122 = sphi 0, %s106
      %s126 = sphi 0, %s126
      %s128 = sphi 0, %s126
      %s129 = sphi 0, %s128
      %s143 = sphi 0, %s129
      %s147 = sphi 0, %s147
      %s149 = sphi 0, %s147
      %s150 = sphi 0, %s149
      %s164 = sphi 0, %s150
      %s170 = sphi 0, %s172
      %s173 = sphi 0, %s170
      %s174 = sphi 0, %s173
      %s190 = sphi 0, %s174
      %s196 = sphi 0, %s198
      %s199 = sphi 0, %s196
      %s200 = sphi 0, %s199
      %s216 = sphi 0, %s200
      %s222 = sphi 0, %s224
      %s225 = sphi 0, %s222
      %s226 = sphi 0, %s225
      %s242 = sphi 0, %s226
      %s248 = sphi 0, %s250
      %s251 = sphi 0, %s248
      %s252 = sphi 0, %s251
      %s268 = sphi 0, %s252
      %s274 = sphi 0, %s276
      %s277 = sphi 0, %s274
      %s278 = sphi 0, %s277
      %s294 = sphi 0, %s278
      %s300 = sphi 0, %s302
      %s303 = sphi 0, %s300
      %s304 = sphi 0, %s303
      %s320 = sphi 0, %s304
      %s326 = sphi 0, %s328
      %s329 = sphi 0, %s326
      %s330 = sphi 0, %s329
      %s346 = sphi 0, %s330
      %s352 = sphi 0, %s354
      %s355 = sphi 0, %s352
      %s356 = sphi 0, %s355
      %s372 = sphi 0, %s356
      %s378 = sphi 0, %s380
      %s381 = sphi 0, %s378
      %s382 = sphi 0, %s381
      %s398 = sphi 0, %s382
      %s404 = sphi 0, %s406
      %s407 = sphi 0, %s404
      %s408 = sphi 0, %s407
      %s424 = sphi 0, %s408
      %s430 = sphi 0, %s432
      %s433 = sphi 0, %s430
      %s434 = sphi 0, %s433
      %s450 = sphi 0, %s434
      %s456 = sphi 0, %s458
      %s459 = sphi 0, %s456
      %s460 = sphi 0, %s459
      %s476 = sphi 0, %s460
      %s482 = sphi 0, %s484
      %s485 = sphi 0, %s482
      %s486 = sphi 0, %s485
      %s502 = sphi 0, %s486
      %s508 = sphi 0, %s510
      %s511 = sphi 0, %s508
      %s512 = sphi 0, %s511
      %s528 = sphi 0, %s512
    $region4: #{mixtext_forward.1} parent=1 // loop_header_branch
      %36 = sbr.rel (%p34) target = $region8
    $region5: #{mixtext_forward.1} parent=1 // loop_body
      %s38 = ssub.s32 %s33, 1
      %s39 = ssub.s32 %s33, 2
      %s46 = sadd.s32 1, %s41
      %p47 = scmp.ge.s32.totalorder %s46, 2
      %s48 = scalar_select %p47, 0, %s46
      %s49 = sadd.s32 1, %s40
      %s50 = scalar_select %p47, %s49, %s40
      %p51 = scmp.ge.s32.totalorder %s50, 2
      %s52 = scalar_select %p51, 0, %s50
      %s53 = ssub.s32 %s40, %s52
      %p54 = scmp.eq.s32.totalorder %s53, 0
      %s56 = sadd.s32 %s55, 1
      %s57 = scalar_select %p54, %s55, %s56
      %p60 = pneg %p54
      %p61 = scmp.eq.s32.totalorder %s33, 3
      %p62 = por %p60, %p61
      %p63 = scmp.ne.s32.totalorder %s55, %s58
      %p64 = scmp.eq.s32.totalorder %s33, 0
      %p65 = por %p63, %p64
      %p66 = scmp.ne.s32.totalorder %s55, %s58
      %p67 = scmp.eq.s32.totalorder %s38, 3
      %p68 = por %p66, %p67
      %p69 = scmp.ne.s32.totalorder %s58, %s59
      %p70 = scmp.eq.s32.totalorder %s38, 0
      %p71 = por %p69, %p70
      %p72 = scmp.ne.s32.totalorder %s58, %s59
      %p73 = scmp.eq.s32.totalorder %s39, 3
      %p74 = por %p72, %p73
      %p76 = scmp.ne.s32.totalorder %s59, %s75
      %p77 = scmp.eq.s32.totalorder %s39, 0
      %p78 = por %p76, %p77
      %s80 = sadd.s32 %s79, 1
      %p83 = scmp.eq.s32.totalorder %s33, 3
      %p84 = scmp.ne.s32.totalorder %s79, %s81
      %p85 = scmp.eq.s32.totalorder %s33, 0
      %p86 = por %p84, %p85
      %p87 = scmp.ne.s32.totalorder %s79, %s81
      %p88 = scmp.eq.s32.totalorder %s38, 3
      %p89 = por %p87, %p88
      %p90 = scmp.ne.s32.totalorder %s81, %s82
      %p91 = scmp.eq.s32.totalorder %s38, 0
      %p92 = por %p90, %p91
      %p93 = scmp.ne.s32.totalorder %s81, %s82
      %p94 = scmp.eq.s32.totalorder %s39, 3
      %p95 = por %p93, %p94
      %p97 = scmp.ne.s32.totalorder %s82, %s96
      %p98 = scmp.eq.s32.totalorder %s39, 0
      %p99 = por %p97, %p98
      %s100 = ssub.s32 %s40, %s52
      %p101 = scmp.eq.s32.totalorder %s100, 0
      %s103 = sadd.s32 %s102, 1
      %s104 = scalar_select %p101, %s102, %s103
      %p107 = pneg %p101
      %p108 = scmp.eq.s32.totalorder %s33, 3
      %p109 = por %p107, %p108
      %p110 = scmp.ne.s32.totalorder %s102, %s105
      %p111 = scmp.eq.s32.totalorder %s33, 0
      %p112 = por %p110, %p111
      %p113 = scmp.ne.s32.totalorder %s102, %s105
      %p114 = scmp.eq.s32.totalorder %s38, 3
      %p115 = por %p113, %p114
      %p116 = scmp.ne.s32.totalorder %s105, %s106
      %p117 = scmp.eq.s32.totalorder %s38, 0
      %p118 = por %p116, %p117
      %p119 = scmp.ne.s32.totalorder %s105, %s106
      %p120 = scmp.eq.s32.totalorder %s39, 3
      %p121 = por %p119, %p120
      %p123 = scmp.ne.s32.totalorder %s106, %s122
      %p124 = scmp.eq.s32.totalorder %s39, 0
      %p125 = por %p123, %p124
      %s127 = sadd.s32 %s126, 1
      %p130 = scmp.eq.s32.totalorder %s33, 3
      %p131 = scmp.ne.s32.totalorder %s126, %s128
      %p132 = scmp.eq.s32.totalorder %s33, 0
      %p133 = por %p131, %p132
      %p134 = scmp.ne.s32.totalorder %s126, %s128
      %p135 = scmp.eq.s32.totalorder %s38, 3
      %p136 = por %p134, %p135
      %p137 = scmp.ne.s32.totalorder %s128, %s129
      %p138 = scmp.eq.s32.totalorder %s38, 0
      %p139 = por %p137, %p138
      %p140 = scmp.ne.s32.totalorder %s128, %s129
      %p141 = scmp.eq.s32.totalorder %s39, 3
      %p142 = por %p140, %p141
      %p144 = scmp.ne.s32.totalorder %s129, %s143
      %p145 = scmp.eq.s32.totalorder %s39, 0
      %p146 = por %p144, %p145
      %s148 = sadd.s32 %s147, 1
      %p151 = scmp.eq.s32.totalorder %s33, 3
      %p152 = scmp.ne.s32.totalorder %s147, %s149
      %p153 = scmp.eq.s32.totalorder %s33, 0
      %p154 = por %p152, %p153
      %p155 = scmp.ne.s32.totalorder %s147, %s149
      %p156 = scmp.eq.s32.totalorder %s38, 3
      %p157 = por %p155, %p156
      %p158 = scmp.ne.s32.totalorder %s149, %s150
      %p159 = scmp.eq.s32.totalorder %s38, 0
      %p160 = por %p158, %p159
      %p161 = scmp.ne.s32.totalorder %s149, %s150
      %p162 = scmp.eq.s32.totalorder %s39, 3
      %p163 = por %p161, %p162
      %p165 = scmp.ne.s32.totalorder %s150, %s164
      %p166 = scmp.eq.s32.totalorder %s39, 0
      %p167 = por %p165, %p166
      %s168 = ssub.s32 %s40, %s52
      %p169 = scmp.eq.s32.totalorder %s168, 0
      %s171 = sadd.s32 %s170, 1
      %s172 = scalar_select %p169, %s170, %s171
      %p175 = pneg %p169
      %p176 = scmp.eq.s32.totalorder %s33, 3
      %p177 = por %p175, %p176
      %p178 = scmp.ne.s32.totalorder %s170, %s173
      %p179 = scmp.eq.s32.totalorder %s33, 0
      %p180 = por %p178, %p179
      %p181 = scmp.ne.s32.totalorder %s170, %s173
      %p182 = scmp.eq.s32.totalorder %s38, 3
      %p183 = por %p181, %p182
      %p184 = scmp.ne.s32.totalorder %s173, %s174
      %p185 = scmp.eq.s32.totalorder %s38, 0
      %p186 = por %p184, %p185
      %p187 = scmp.ne.s32.totalorder %s173, %s174
      %p188 = scmp.eq.s32.totalorder %s39, 3
      %p189 = por %p187, %p188
      %p191 = scmp.ne.s32.totalorder %s174, %s190
      %p192 = scmp.eq.s32.totalorder %s39, 0
      %p193 = por %p191, %p192
      %s194 = ssub.s32 %s41, %s48
      %p195 = scmp.eq.s32.totalorder %s194, 0
      %s197 = sadd.s32 %s196, 1
      %s198 = scalar_select %p195, %s196, %s197
      %p201 = pneg %p195
      %p202 = scmp.eq.s32.totalorder %s33, 3
      %p203 = por %p201, %p202
      %p204 = scmp.ne.s32.totalorder %s196, %s199
      %p205 = scmp.eq.s32.totalorder %s33, 0
      %p206 = por %p204, %p205
      %p207 = scmp.ne.s32.totalorder %s196, %s199
      %p208 = scmp.eq.s32.totalorder %s38, 3
      %p209 = por %p207, %p208
      %p210 = scmp.ne.s32.totalorder %s199, %s200
      %p211 = scmp.eq.s32.totalorder %s38, 0
      %p212 = por %p210, %p211
      %p213 = scmp.ne.s32.totalorder %s199, %s200
      %p214 = scmp.eq.s32.totalorder %s39, 3
      %p215 = por %p213, %p214
      %p217 = scmp.ne.s32.totalorder %s200, %s216
      %p218 = scmp.eq.s32.totalorder %s39, 0
      %p219 = por %p217, %p218
      %s220 = ssub.s32 %s41, %s48
      %p221 = scmp.eq.s32.totalorder %s220, 0
      %s223 = sadd.s32 %s222, 1
      %s224 = scalar_select %p221, %s222, %s223
      %p227 = pneg %p221
      %p228 = scmp.eq.s32.totalorder %s33, 3
      %p229 = por %p227, %p228
      %p230 = scmp.ne.s32.totalorder %s222, %s225
      %p231 = scmp.eq.s32.totalorder %s33, 0
      %p232 = por %p230, %p231
      %p233 = scmp.ne.s32.totalorder %s222, %s225
      %p234 = scmp.eq.s32.totalorder %s38, 3
      %p235 = por %p233, %p234
      %p236 = scmp.ne.s32.totalorder %s225, %s226
      %p237 = scmp.eq.s32.totalorder %s38, 0
      %p238 = por %p236, %p237
      %p239 = scmp.ne.s32.totalorder %s225, %s226
      %p240 = scmp.eq.s32.totalorder %s39, 3
      %p241 = por %p239, %p240
      %p243 = scmp.ne.s32.totalorder %s226, %s242
      %p244 = scmp.eq.s32.totalorder %s39, 0
      %p245 = por %p243, %p244
      %s246 = ssub.s32 %s41, %s48
      %p247 = scmp.eq.s32.totalorder %s246, 0
      %s249 = sadd.s32 %s248, 1
      %s250 = scalar_select %p247, %s248, %s249
      %p253 = pneg %p247
      %p254 = scmp.eq.s32.totalorder %s33, 3
      %p255 = por %p253, %p254
      %p256 = scmp.ne.s32.totalorder %s248, %s251
      %p257 = scmp.eq.s32.totalorder %s33, 0
      %p258 = por %p256, %p257
      %p259 = scmp.ne.s32.totalorder %s248, %s251
      %p260 = scmp.eq.s32.totalorder %s38, 3
      %p261 = por %p259, %p260
      %p262 = scmp.ne.s32.totalorder %s251, %s252
      %p263 = scmp.eq.s32.totalorder %s38, 0
      %p264 = por %p262, %p263
      %p265 = scmp.ne.s32.totalorder %s251, %s252
      %p266 = scmp.eq.s32.totalorder %s39, 3
      %p267 = por %p265, %p266
      %p269 = scmp.ne.s32.totalorder %s252, %s268
      %p270 = scmp.eq.s32.totalorder %s39, 0
      %p271 = por %p269, %p270
      %s272 = ssub.s32 %s41, %s48
      %p273 = scmp.eq.s32.totalorder %s272, 0
      %s275 = sadd.s32 %s274, 1
      %s276 = scalar_select %p273, %s274, %s275
      %p279 = pneg %p273
      %p280 = scmp.eq.s32.totalorder %s33, 3
      %p281 = por %p279, %p280
      %p282 = scmp.ne.s32.totalorder %s274, %s277
      %p283 = scmp.eq.s32.totalorder %s33, 0
      %p284 = por %p282, %p283
      %p285 = scmp.ne.s32.totalorder %s274, %s277
      %p286 = scmp.eq.s32.totalorder %s38, 3
      %p287 = por %p285, %p286
      %p288 = scmp.ne.s32.totalorder %s277, %s278
      %p289 = scmp.eq.s32.totalorder %s38, 0
      %p290 = por %p288, %p289
      %p291 = scmp.ne.s32.totalorder %s277, %s278
      %p292 = scmp.eq.s32.totalorder %s39, 3
      %p293 = por %p291, %p292
      %p295 = scmp.ne.s32.totalorder %s278, %s294
      %p296 = scmp.eq.s32.totalorder %s39, 0
      %p297 = por %p295, %p296
      %s298 = ssub.s32 %s41, %s48
      %p299 = scmp.eq.s32.totalorder %s298, 0
      %s301 = sadd.s32 %s300, 1
      %s302 = scalar_select %p299, %s300, %s301
      %p305 = pneg %p299
      %p306 = scmp.eq.s32.totalorder %s33, 3
      %p307 = por %p305, %p306
      %p308 = scmp.ne.s32.totalorder %s300, %s303
      %p309 = scmp.eq.s32.totalorder %s33, 0
      %p310 = por %p308, %p309
      %p311 = scmp.ne.s32.totalorder %s300, %s303
      %p312 = scmp.eq.s32.totalorder %s38, 3
      %p313 = por %p311, %p312
      %p314 = scmp.ne.s32.totalorder %s303, %s304
      %p315 = scmp.eq.s32.totalorder %s38, 0
      %p316 = por %p314, %p315
      %p317 = scmp.ne.s32.totalorder %s303, %s304
      %p318 = scmp.eq.s32.totalorder %s39, 3
      %p319 = por %p317, %p318
      %p321 = scmp.ne.s32.totalorder %s304, %s320
      %p322 = scmp.eq.s32.totalorder %s39, 0
      %p323 = por %p321, %p322
      %s324 = ssub.s32 %s41, %s48
      %p325 = scmp.eq.s32.totalorder %s324, 0
      %s327 = sadd.s32 %s326, 1
      %s328 = scalar_select %p325, %s326, %s327
      %p331 = pneg %p325
      %p332 = scmp.eq.s32.totalorder %s33, 3
      %p333 = por %p331, %p332
      %p334 = scmp.ne.s32.totalorder %s326, %s329
      %p335 = scmp.eq.s32.totalorder %s33, 0
      %p336 = por %p334, %p335
      %p337 = scmp.ne.s32.totalorder %s326, %s329
      %p338 = scmp.eq.s32.totalorder %s38, 3
      %p339 = por %p337, %p338
      %p340 = scmp.ne.s32.totalorder %s329, %s330
      %p341 = scmp.eq.s32.totalorder %s38, 0
      %p342 = por %p340, %p341
      %p343 = scmp.ne.s32.totalorder %s329, %s330
      %p344 = scmp.eq.s32.totalorder %s39, 3
      %p345 = por %p343, %p344
      %p347 = scmp.ne.s32.totalorder %s330, %s346
      %p348 = scmp.eq.s32.totalorder %s39, 0
      %p349 = por %p347, %p348
      %s350 = ssub.s32 %s41, %s48
      %p351 = scmp.eq.s32.totalorder %s350, 0
      %s353 = sadd.s32 %s352, 1
      %s354 = scalar_select %p351, %s352, %s353
      %p357 = pneg %p351
      %p358 = scmp.eq.s32.totalorder %s33, 3
      %p359 = por %p357, %p358
      %p360 = scmp.ne.s32.totalorder %s352, %s355
      %p361 = scmp.eq.s32.totalorder %s33, 0
      %p362 = por %p360, %p361
      %p363 = scmp.ne.s32.totalorder %s352, %s355
      %p364 = scmp.eq.s32.totalorder %s38, 3
      %p365 = por %p363, %p364
      %p366 = scmp.ne.s32.totalorder %s355, %s356
      %p367 = scmp.eq.s32.totalorder %s38, 0
      %p368 = por %p366, %p367
      %p369 = scmp.ne.s32.totalorder %s355, %s356
      %p370 = scmp.eq.s32.totalorder %s39, 3
      %p371 = por %p369, %p370
      %p373 = scmp.ne.s32.totalorder %s356, %s372
      %p374 = scmp.eq.s32.totalorder %s39, 0
      %p375 = por %p373, %p374
      %s376 = ssub.s32 %s41, %s48
      %p377 = scmp.eq.s32.totalorder %s376, 0
      %s379 = sadd.s32 %s378, 1
      %s380 = scalar_select %p377, %s378, %s379
      %p383 = pneg %p377
      %p384 = scmp.eq.s32.totalorder %s33, 3
      %p385 = por %p383, %p384
      %p386 = scmp.ne.s32.totalorder %s378, %s381
      %p387 = scmp.eq.s32.totalorder %s33, 0
      %p388 = por %p386, %p387
      %p389 = scmp.ne.s32.totalorder %s378, %s381
      %p390 = scmp.eq.s32.totalorder %s38, 3
      %p391 = por %p389, %p390
      %p392 = scmp.ne.s32.totalorder %s381, %s382
      %p393 = scmp.eq.s32.totalorder %s38, 0
      %p394 = por %p392, %p393
      %p395 = scmp.ne.s32.totalorder %s381, %s382
      %p396 = scmp.eq.s32.totalorder %s39, 3
      %p397 = por %p395, %p396
      %p399 = scmp.ne.s32.totalorder %s382, %s398
      %p400 = scmp.eq.s32.totalorder %s39, 0
      %p401 = por %p399, %p400
      %s402 = ssub.s32 %s41, %s48
      %p403 = scmp.eq.s32.totalorder %s402, 0
      %s405 = sadd.s32 %s404, 1
      %s406 = scalar_select %p403, %s404, %s405
      %p409 = pneg %p403
      %p410 = scmp.eq.s32.totalorder %s33, 3
      %p411 = por %p409, %p410
      %p412 = scmp.ne.s32.totalorder %s404, %s407
      %p413 = scmp.eq.s32.totalorder %s33, 0
      %p414 = por %p412, %p413
      %p415 = scmp.ne.s32.totalorder %s404, %s407
      %p416 = scmp.eq.s32.totalorder %s38, 3
      %p417 = por %p415, %p416
      %p418 = scmp.ne.s32.totalorder %s407, %s408
      %p419 = scmp.eq.s32.totalorder %s38, 0
      %p420 = por %p418, %p419
      %p421 = scmp.ne.s32.totalorder %s407, %s408
      %p422 = scmp.eq.s32.totalorder %s39, 3
      %p423 = por %p421, %p422
      %p425 = scmp.ne.s32.totalorder %s408, %s424
      %p426 = scmp.eq.s32.totalorder %s39, 0
      %p427 = por %p425, %p426
      %s428 = ssub.s32 %s41, %s48
      %p429 = scmp.eq.s32.totalorder %s428, 0
      %s431 = sadd.s32 %s430, 1
      %s432 = scalar_select %p429, %s430, %s431
      %p435 = pneg %p429
      %p436 = scmp.eq.s32.totalorder %s33, 3
      %p437 = por %p435, %p436
      %p438 = scmp.ne.s32.totalorder %s430, %s433
      %p439 = scmp.eq.s32.totalorder %s33, 0
      %p440 = por %p438, %p439
      %p441 = scmp.ne.s32.totalorder %s430, %s433
      %p442 = scmp.eq.s32.totalorder %s38, 3
      %p443 = por %p441, %p442
      %p444 = scmp.ne.s32.totalorder %s433, %s434
      %p445 = scmp.eq.s32.totalorder %s38, 0
      %p446 = por %p444, %p445
      %p447 = scmp.ne.s32.totalorder %s433, %s434
      %p448 = scmp.eq.s32.totalorder %s39, 3
      %p449 = por %p447, %p448
      %p451 = scmp.ne.s32.totalorder %s434, %s450
      %p452 = scmp.eq.s32.totalorder %s39, 0
      %p453 = por %p451, %p452
      %s454 = ssub.s32 %s41, %s48
      %p455 = scmp.eq.s32.totalorder %s454, 0
      %s457 = sadd.s32 %s456, 1
      %s458 = scalar_select %p455, %s456, %s457
      %p461 = pneg %p455
      %p462 = scmp.eq.s32.totalorder %s33, 3
      %p463 = por %p461, %p462
      %p464 = scmp.ne.s32.totalorder %s456, %s459
      %p465 = scmp.eq.s32.totalorder %s33, 0
      %p466 = por %p464, %p465
      %p467 = scmp.ne.s32.totalorder %s456, %s459
      %p468 = scmp.eq.s32.totalorder %s38, 3
      %p469 = por %p467, %p468
      %p470 = scmp.ne.s32.totalorder %s459, %s460
      %p471 = scmp.eq.s32.totalorder %s38, 0
      %p472 = por %p470, %p471
      %p473 = scmp.ne.s32.totalorder %s459, %s460
      %p474 = scmp.eq.s32.totalorder %s39, 3
      %p475 = por %p473, %p474
      %p477 = scmp.ne.s32.totalorder %s460, %s476
      %p478 = scmp.eq.s32.totalorder %s39, 0
      %p479 = por %p477, %p478
      %s480 = ssub.s32 %s41, %s48
      %p481 = scmp.eq.s32.totalorder %s480, 0
      %s483 = sadd.s32 %s482, 1
      %s484 = scalar_select %p481, %s482, %s483
      %p487 = pneg %p481
      %p488 = scmp.eq.s32.totalorder %s33, 3
      %p489 = por %p487, %p488
      %p490 = scmp.ne.s32.totalorder %s482, %s485
      %p491 = scmp.eq.s32.totalorder %s33, 0
      %p492 = por %p490, %p491
      %p493 = scmp.ne.s32.totalorder %s482, %s485
      %p494 = scmp.eq.s32.totalorder %s38, 3
      %p495 = por %p493, %p494
      %p496 = scmp.ne.s32.totalorder %s485, %s486
      %p497 = scmp.eq.s32.totalorder %s38, 0
      %p498 = por %p496, %p497
      %p499 = scmp.ne.s32.totalorder %s485, %s486
      %p500 = scmp.eq.s32.totalorder %s39, 3
      %p501 = por %p499, %p500
      %p503 = scmp.ne.s32.totalorder %s486, %s502
      %p504 = scmp.eq.s32.totalorder %s39, 0
      %p505 = por %p503, %p504
      %s506 = ssub.s32 %s40, %s52
      %p507 = scmp.eq.s32.totalorder %s506, 0
      %s509 = sadd.s32 %s508, 1
      %s510 = scalar_select %p507, %s508, %s509
      %p513 = pneg %p507
      %p514 = scmp.eq.s32.totalorder %s33, 3
      %p515 = por %p513, %p514
      %p516 = scmp.ne.s32.totalorder %s508, %s511
      %p517 = scmp.eq.s32.totalorder %s33, 0
      %p518 = por %p516, %p517
      %p519 = scmp.ne.s32.totalorder %s508, %s511
      %p520 = scmp.eq.s32.totalorder %s38, 3
      %p521 = por %p519, %p520
      %p522 = scmp.ne.s32.totalorder %s511, %s512
      %p523 = scmp.eq.s32.totalorder %s38, 0
      %p524 = por %p522, %p523
      %p525 = scmp.ne.s32.totalorder %s511, %s512
      %p526 = scmp.eq.s32.totalorder %s39, 3
      %p527 = por %p525, %p526
      %p529 = scmp.ne.s32.totalorder %s512, %s528
      %p530 = scmp.eq.s32.totalorder %s39, 0
      %p531 = por %p529, %p530
      %p532 = scmp.le.s32.totalorder 1, %s33
      %p533 = scmp.lt.s32.totalorder %s33, 5
      %p534 = pnand %p532, %p533
      %p535 = pneg %p534
      // Predicated region
      $region9: #{mixtext_forward.1} parent=5 // pred_check
        _
      $region10: #{mixtext_forward.1} parent=5 // pred_check_branch
        %537 = sbr.rel (%p534) target = $region12
      $region11: #{mixtext_forward.1} parent=5 // pred_region
        %s538 = ssub.s32 %s33, 1
        // Predicated region
        $region13: #{mixtext_forward.1} parent=11 // pred_check
          %p539 = pneg %p92
        $region14: #{mixtext_forward.1} parent=11 // pred_check_branch
          %541 = sbr.rel (%p539) target = $region16
        $region15: #{mixtext_forward.1} parent=11 // pred_region
          _
        $region16: #{mixtext_forward.1} parent=11 // pred_fallthru
          _
        // Predicated region
        $region17: #{mixtext_forward.1} parent=11 // pred_check
          %p542 = pneg %p139
        $region18: #{mixtext_forward.1} parent=11 // pred_check_branch
          %544 = sbr.rel (%p542) target = $region20
        $region19: #{mixtext_forward.1} parent=11 // pred_region
          _
        $region20: #{mixtext_forward.1} parent=11 // pred_fallthru
          _
        // Predicated region
        $region21: #{mixtext_forward.1} parent=11 // pred_check
          %p545 = pneg %p160
        $region22: #{mixtext_forward.1} parent=11 // pred_check_branch
          %547 = sbr.rel (%p545) target = $region24
        $region23: #{mixtext_forward.1} parent=11 // pred_region
          _
        $region24: #{mixtext_forward.1} parent=11 // pred_fallthru
          _
      $region12: #{mixtext_forward.1} parent=5 // pred_fallthru
        _
      %p548 = scmp.lt.s32.totalorder %s33, 4
      // Predicated region
      $region25: #{mixtext_forward.1} parent=5 // pred_check
        %p549 = pneg %p548
      $region26: #{mixtext_forward.1} parent=5 // pred_check_branch
        %551 = sbr.rel (%p549) target = $region28
      $region27: #{mixtext_forward.1} parent=5 // pred_region
        // Predicated region
        $region29: #{mixtext_forward.1} parent=27 // pred_check
          %p552 = pneg %p65
        $region30: #{mixtext_forward.1} parent=27 // pred_check_branch
          %554 = sbr.rel (%p552) target = $region32
        $region31: #{mixtext_forward.1} parent=27 // pred_region
          %p555 = scmp.lt.s32.totalorder %s40, 1
          %s556 = scalar_select %p555, %s40, 1
          %s557 = smul.addr %s556, 8
          %s558 = scalar_lea.vmem %s0, %s557
        $region32: #{mixtext_forward.1} parent=27 // pred_fallthru
          _
        // Predicated region
        $region33: #{mixtext_forward.1} parent=27 // pred_check
          %p559 = pneg %p112
        $region34: #{mixtext_forward.1} parent=27 // pred_check_branch
          %561 = sbr.rel (%p559) target = $region36
        $region35: #{mixtext_forward.1} parent=27 // pred_region
          %p562 = scmp.lt.s32.totalorder %s40, 1
          %s563 = scalar_select %p562, %s40, 1
          %s564 = smul.addr %s563, 8
          %s565 = scalar_lea.vmem %s2, %s564
        $region36: #{mixtext_forward.1} parent=27 // pred_fallthru
          _
        // Predicated region
        $region37: #{mixtext_forward.1} parent=27 // pred_check
          %p566 = pneg %p180
        $region38: #{mixtext_forward.1} parent=27 // pred_check_branch
          %568 = sbr.rel (%p566) target = $region40
        $region39: #{mixtext_forward.1} parent=27 // pred_region
          %p569 = scmp.lt.s32.totalorder %s40, 1
          %s570 = scalar_select %p569, %s40, 1
          %s571 = scalar_lea.vmem %s5, %s570
        $region40: #{mixtext_forward.1} parent=27 // pred_fallthru
          _
        // Predicated region
        $region41: #{mixtext_forward.1} parent=27 // pred_check
          %p572 = pneg %p206
        $region42: #{mixtext_forward.1} parent=27 // pred_check_branch
          %574 = sbr.rel (%p572) target = $region44
        $region43: #{mixtext_forward.1} parent=27 // pred_region
          %s575 = sand.u32 %s196, 1
          %s576 = scalar_lea.sflag [#allocation4], %s575
          %s577 = sand.u32 %s196, 1
          %s578 = smul.addr %s577, 192
          %s579 = scalar_lea.vmem [#allocation3], %s578
          %s581 = ssub.s32 3072, 3072
          %582 = vsyncadd %s576, %s581
          %s583 = smul.addr %s41, 48
          %s584 = smul.addr %s583, 64
          %s585 = scalar_lea.hbm %s6, %s584
          %s586 = sshll.u32 %s579, 4
          %s587 = int_to_ptr.vmem [resolvable:$true] %s586
          %592 = dma.hbm_to_vmem [thread:$0]  %s585, 3072, %s587, %s576, 192, 192, 12
        $region44: #{mixtext_forward.1} parent=27 // pred_fallthru
          _
        // Predicated region
        $region45: #{mixtext_forward.1} parent=27 // pred_check
          %p593 = pneg %p232
        $region46: #{mixtext_forward.1} parent=27 // pred_check_branch
          %595 = sbr.rel (%p593) target = $region48
        $region47: #{mixtext_forward.1} parent=27 // pred_region
          %p596 = scmp.lt.s32.totalorder %s41, 1
          %s597 = scalar_select %p596, %s41, 1
          %s598 = smul.addr %s597, 3
          %s599 = scalar_lea.vmem %s7, %s598
        $region48: #{mixtext_forward.1} parent=27 // pred_fallthru
          _
        // Predicated region
        $region49: #{mixtext_forward.1} parent=27 // pred_check
          %p600 = pneg %p258
        $region50: #{mixtext_forward.1} parent=27 // pred_check_branch
          %602 = sbr.rel (%p600) target = $region52
        $region51: #{mixtext_forward.1} parent=27 // pred_region
          %p603 = scmp.lt.s32.totalorder %s41, 1
          %s604 = scalar_select %p603, %s41, 1
          %s605 = smul.addr %s604, 16
          %s606 = smul.addr %s605, 4
          %s607 = scalar_lea.vmem %s8, %s606
        $region52: #{mixtext_forward.1} parent=27 // pred_fallthru
          _
        // Predicated region
        $region53: #{mixtext_forward.1} parent=27 // pred_check
          %p608 = pneg %p284
        $region54: #{mixtext_forward.1} parent=27 // pred_check_branch
          %610 = sbr.rel (%p608) target = $region56
        $region55: #{mixtext_forward.1} parent=27 // pred_region
          %p611 = scmp.lt.s32.totalorder %s41, 1
          %s612 = scalar_select %p611, %s41, 1
          %s613 = scalar_lea.vmem %s9, %s612
        $region56: #{mixtext_forward.1} parent=27 // pred_fallthru
          _
        // Predicated region
        $region57: #{mixtext_forward.1} parent=27 // pred_check
          %p614 = pneg %p310
        $region58: #{mixtext_forward.1} parent=27 // pred_check_branch
          %616 = sbr.rel (%p614) target = $region60
        $region59: #{mixtext_forward.1} parent=27 // pred_region
          %p617 = scmp.lt.s32.totalorder %s41, 1
          %s618 = scalar_select %p617, %s41, 1
          %s619 = scalar_lea.vmem %s10, %s618
        $region60: #{mixtext_forward.1} parent=27 // pred_fallthru
          _
        // Predicated region
        $region61: #{mixtext_forward.1} parent=27 // pred_check
          %p620 = pneg %p336
        $region62: #{mixtext_forward.1} parent=27 // pred_check_branch
          %622 = sbr.rel (%p620) target = $region64
        $region63: #{mixtext_forward.1} parent=27 // pred_region
          %p623 = scmp.lt.s32.totalorder %s41, 1
          %s624 = scalar_select %p623, %s41, 1
          %s625 = scalar_lea.vmem %s11, %s624
        $region64: #{mixtext_forward.1} parent=27 // pred_fallthru
          _
        // Predicated region
        $region65: #{mixtext_forward.1} parent=27 // pred_check
          %p626 = pneg %p362
        $region66: #{mixtext_forward.1} parent=27 // pred_check_branch
          %628 = sbr.rel (%p626) target = $region68
        $region67: #{mixtext_forward.1} parent=27 // pred_region
          %s629 = sand.u32 %s33, 1
          %s630 = scalar_lea.sflag [#allocation7], %s629
          %s631 = sand.u32 %s352, 1
          %s632 = smul.addr %s631, 128
          %s633 = scalar_lea.vmem [#allocation6], %s632
          %s635 = ssub.s32 2048, 2048
          %636 = vsyncadd %s630, %s635
          %s637 = smul.addr %s41, 32
          %s638 = smul.addr %s637, 64
          %s639 = scalar_lea.hbm %s12, %s638
          %s640 = sshll.u32 %s633, 4
          %s641 = int_to_ptr.vmem [resolvable:$true] %s640
          %646 = dma.hbm_to_vmem [thread:$0]  %s639, 2048, %s641, %s630, 128, 128, 8
        $region68: #{mixtext_forward.1} parent=27 // pred_fallthru
          _
        // Predicated region
        $region69: #{mixtext_forward.1} parent=27 // pred_check
          %p647 = pneg %p388
        $region70: #{mixtext_forward.1} parent=27 // pred_check_branch
          %649 = sbr.rel (%p647) target = $region72
        $region71: #{mixtext_forward.1} parent=27 // pred_region
          %p650 = scmp.lt.s32.totalorder %s41, 1
          %s651 = scalar_select %p650, %s41, 1
          %s652 = smul.addr %s651, 2
          %s653 = scalar_lea.vmem %s13, %s652
        $region72: #{mixtext_forward.1} parent=27 // pred_fallthru
          _
        // Predicated region
        $region73: #{mixtext_forward.1} parent=27 // pred_check
          %p654 = pneg %p414
        $region74: #{mixtext_forward.1} parent=27 // pred_check_branch
          %656 = sbr.rel (%p654) target = $region76
        $region75: #{mixtext_forward.1} parent=27 // pred_region
          %s657 = sand.u32 %s33, 1
          %s658 = scalar_lea.sflag [#allocation7], %s657
          %s659 = sand.u32 %s404, 1
          %s660 = smul.addr %s659, 128
          %s661 = scalar_lea.vmem [#allocation8], %s660
          %s663 = ssub.s32 2048, 2048
          %664 = vsyncadd %s658, %s663
          %s665 = smul.addr %s41, 32
          %s666 = smul.addr %s665, 64
          %s667 = scalar_lea.hbm %s14, %s666
          %s668 = sshll.u32 %s661, 4
          %s669 = int_to_ptr.vmem [resolvable:$true] %s668
          %674 = dma.hbm_to_vmem [thread:$0]  %s667, 2048, %s669, %s658, 64, 64, 4
        $region76: #{mixtext_forward.1} parent=27 // pred_fallthru
          _
        // Predicated region
        $region77: #{mixtext_forward.1} parent=27 // pred_check
          %p675 = pneg %p440
        $region78: #{mixtext_forward.1} parent=27 // pred_check_branch
          %677 = sbr.rel (%p675) target = $region80
        $region79: #{mixtext_forward.1} parent=27 // pred_region
          %p678 = scmp.lt.s32.totalorder %s41, 1
          %s679 = scalar_select %p678, %s41, 1
          %s680 = scalar_lea.vmem %s15, %s679
        $region80: #{mixtext_forward.1} parent=27 // pred_fallthru
          _
        // Predicated region
        $region81: #{mixtext_forward.1} parent=27 // pred_check
          %p681 = pneg %p466
        $region82: #{mixtext_forward.1} parent=27 // pred_check_branch
          %683 = sbr.rel (%p681) target = $region84
        $region83: #{mixtext_forward.1} parent=27 // pred_region
          %p684 = scmp.lt.s32.totalorder %s41, 1
          %s685 = scalar_select %p684, %s41, 1
          %s686 = scalar_lea.vmem %s16, %s685
        $region84: #{mixtext_forward.1} parent=27 // pred_fallthru
          _
        // Predicated region
        $region85: #{mixtext_forward.1} parent=27 // pred_check
          %p687 = pneg %p492
        $region86: #{mixtext_forward.1} parent=27 // pred_check_branch
          %689 = sbr.rel (%p687) target = $region88
        $region87: #{mixtext_forward.1} parent=27 // pred_region
          %p690 = scmp.lt.s32.totalorder %s41, 1
          %s691 = scalar_select %p690, %s41, 1
          %s692 = scalar_lea.vmem %s17, %s691
        $region88: #{mixtext_forward.1} parent=27 // pred_fallthru
          _
      $region28: #{mixtext_forward.1} parent=5 // pred_fallthru
        _
      %p693 = scmp.le.s32.totalorder 1, %s33
      %p694 = scmp.lt.s32.totalorder %s33, 5
      %p695 = pnand %p693, %p694
      %p696 = pneg %p695
      // Predicated region
      $region89: #{mixtext_forward.1} parent=5 // pred_check
        _
      $region90: #{mixtext_forward.1} parent=5 // pred_check_branch
        %698 = sbr.rel (%p695) target = $region92
      $region91: #{mixtext_forward.1} parent=5 // pred_region
        %s699 = ssub.s32 %s33, 1
        %s700 = sand.u32 %s199, 1
        %s701 = scalar_lea.sflag [#allocation4], %s700
        %s702 = sand.u32 %s199, 1
        %s703 = smul.addr %s702, 192
        %s704 = scalar_lea.vmem [#allocation3], %s703
        // Predicated region
        $region93: #{mixtext_forward.1} parent=91 // pred_check
          %p705 = pneg %p212
        $region94: #{mixtext_forward.1} parent=91 // pred_check_branch
          %707 = sbr.rel (%p705) target = $region96
        $region95: #{mixtext_forward.1} parent=91 // pred_region
          %708 = dma.done %s701, 3072
        $region96: #{mixtext_forward.1} parent=91 // pred_fallthru
          _
        %s709 = sand.u32 %s38, 1
        %s710 = scalar_lea.sflag [#allocation7], %s709
        %s711 = sand.u32 %s355, 1
        %s712 = smul.addr %s711, 128
        %s713 = scalar_lea.vmem [#allocation6], %s712
        // Predicated region
        $region97: #{mixtext_forward.1} parent=91 // pred_check
          %p714 = pneg %p368
        $region98: #{mixtext_forward.1} parent=91 // pred_check_branch
          %716 = sbr.rel (%p714) target = $region100
        $region99: #{mixtext_forward.1} parent=91 // pred_region
          %717 = dma.done %s710, 2048
        $region100: #{mixtext_forward.1} parent=91 // pred_fallthru
          _
        %s718 = sand.u32 %s38, 1
        %s719 = scalar_lea.sflag [#allocation7], %s718
        %s720 = sand.u32 %s407, 1
        %s721 = smul.addr %s720, 128
        %s722 = scalar_lea.vmem [#allocation8], %s721
        // Predicated region
        $region101: #{mixtext_forward.1} parent=91 // pred_check
          %p723 = pneg %p420
        $region102: #{mixtext_forward.1} parent=91 // pred_check_branch
          %725 = sbr.rel (%p723) target = $region104
        $region103: #{mixtext_forward.1} parent=91 // pred_region
          %726 = dma.done %s719, 2048
        $region104: #{mixtext_forward.1} parent=91 // pred_fallthru
          _
        %p727 = scmp.lt.s32.totalorder %s42, 1
        %s728 = scalar_select %p727, %s42, 1
        %s729 = smul.addr %s728, 8
        %s730 = scalar_lea.vmem %s0, %s729
        %p731 = pneg %p71
        %p732 = pneg %p68
        %p733 = pneg %p92
        %p734 = pneg %p89
        %p735 = scmp.lt.s32.totalorder %s42, 1
        %s736 = scalar_select %p735, %s42, 1
        %s737 = smul.addr %s736, 8
        %s738 = scalar_lea.vmem %s2, %s737
        %p739 = pneg %p118
        %p740 = pneg %p115
        %p741 = pneg %p139
        %p742 = pneg %p136
        %p743 = pneg %p160
        %p744 = pneg %p157
        %p745 = scmp.lt.s32.totalorder %s42, 1
        %s746 = scalar_select %p745, %s42, 1
        %s747 = scalar_lea.vmem %s5, %s746
        %p748 = pneg %p186
        %p749 = pneg %p183
        %s750 = sand.u32 %s199, 1
        %s751 = scalar_lea.sflag [#allocation4], %s750
        %s752 = sand.u32 %s199, 1
        %s753 = smul.addr %s752, 192
        %s754 = scalar_lea.vmem [#allocation3], %s753
        %p755 = pneg %p212
        %p756 = pneg %p209
        %p757 = scmp.lt.s32.totalorder %s43, 1
        %s758 = scalar_select %p757, %s43, 1
        %s759 = smul.addr %s758, 3
        %s760 = scalar_lea.vmem %s7, %s759
        %p761 = pneg %p238
        %p762 = pneg %p235
        %p763 = scmp.lt.s32.totalorder %s43, 1
        %s764 = scalar_select %p763, %s43, 1
        %s765 = smul.addr %s764, 16
        %s766 = smul.addr %s765, 4
        %s767 = scalar_lea.vmem %s8, %s766
        %p768 = pneg %p264
        %p769 = pneg %p261
        %p770 = scmp.lt.s32.totalorder %s43, 1
        %s771 = scalar_select %p770, %s43, 1
        %s772 = scalar_lea.vmem %s9, %s771
        %p773 = pneg %p290
        %p774 = pneg %p287
        %p775 = scmp.lt.s32.totalorder %s43, 1
        %s776 = scalar_select %p775, %s43, 1
        %s777 = scalar_lea.vmem %s10, %s776
        %p778 = pneg %p316
        %p779 = pneg %p313
        %p780 = scmp.lt.s32.totalorder %s43, 1
        %s781 = scalar_select %p780, %s43, 1
        %s782 = scalar_lea.vmem %s11, %s781
        %p783 = pneg %p342
        %p784 = pneg %p339
        %s785 = sand.u32 %s38, 1
        %s786 = scalar_lea.sflag [#allocation7], %s785
        %s787 = sand.u32 %s355, 1
        %s788 = smul.addr %s787, 128
        %s789 = scalar_lea.vmem [#allocation6], %s788
        %p790 = pneg %p368
        %p791 = pneg %p365
        %p792 = scmp.lt.s32.totalorder %s43, 1
        %s793 = scalar_select %p792, %s43, 1
        %s794 = smul.addr %s793, 2
        %s795 = scalar_lea.vmem %s13, %s794
        %p796 = pneg %p394
        %p797 = pneg %p391
        %s798 = sand.u32 %s38, 1
        %s799 = scalar_lea.sflag [#allocation7], %s798
        %s800 = sand.u32 %s407, 1
        %s801 = smul.addr %s800, 128
        %s802 = scalar_lea.vmem [#allocation8], %s801
        %p803 = pneg %p420
        %p804 = pneg %p417
        %p805 = scmp.lt.s32.totalorder %s43, 1
        %s806 = scalar_select %p805, %s43, 1
        %s807 = scalar_lea.vmem %s15, %s806
        %p808 = pneg %p446
        %p809 = pneg %p443
        %p810 = scmp.lt.s32.totalorder %s43, 1
        %s811 = scalar_select %p810, %s43, 1
        %s812 = scalar_lea.vmem %s16, %s811
        %p813 = pneg %p472
        %p814 = pneg %p469
        %p815 = scmp.lt.s32.totalorder %s43, 1
        %s816 = scalar_select %p815, %s43, 1
        %s817 = scalar_lea.vmem %s17, %s816
        %p818 = pneg %p498
        %p819 = pneg %p495
        %p820 = pneg %p524
        %p821 = pneg %p521
        %s822 = sand.u32 %s511, 1
        %s823 = scalar_lea.sflag [#allocation5], %s822
        %s824 = sand.u32 %s511, 1
        %s825 = scalar_lea.vmem [#allocation9], %s824
        %p826 = scmp.lt.s32.totalorder %s42, 1
        %s827 = scalar_select %p826, %s42, 1
        %s828 = smul.addr %s827, 8
        %s829 = scalar_lea.vmem %s0, %s828
        %p830 = scmp.lt.s32.totalorder %s42, 1
        %s831 = scalar_select %p830, %s42, 1
        %s832 = smul.addr %s831, 8
        %s833 = scalar_lea.vmem %s2, %s832
        %p834 = scmp.lt.s32.totalorder %s42, 1
        %s835 = scalar_select %p834, %s42, 1
        %s836 = scalar_lea.vmem %s5, %s835
        %p837 = scmp.lt.s32.totalorder %s43, 1
        %s838 = scalar_select %p837, %s43, 1
        %s839 = smul.addr %s838, 3
        %s840 = scalar_lea.vmem %s7, %s839
        %p841 = scmp.lt.s32.totalorder %s43, 1
        %s842 = scalar_select %p841, %s43, 1
        %s843 = smul.addr %s842, 16
        %s844 = smul.addr %s843, 4
        %s845 = scalar_lea.vmem %s8, %s844
        %p846 = scmp.lt.s32.totalorder %s43, 1
        %s847 = scalar_select %p846, %s43, 1
        %s848 = scalar_lea.vmem %s9, %s847
        %p849 = scmp.lt.s32.totalorder %s43, 1
        %s850 = scalar_select %p849, %s43, 1
        %s851 = scalar_lea.vmem %s10, %s850
        %p852 = scmp.lt.s32.totalorder %s43, 1
        %s853 = scalar_select %p852, %s43, 1
        %s854 = scalar_lea.vmem %s11, %s853
        %p855 = scmp.lt.s32.totalorder %s43, 1
        %s856 = scalar_select %p855, %s43, 1
        %s857 = smul.addr %s856, 2
        %s858 = scalar_lea.vmem %s13, %s857
        %p859 = scmp.lt.s32.totalorder %s43, 1
        %s860 = scalar_select %p859, %s43, 1
        %s861 = scalar_lea.vmem %s15, %s860
        %p862 = scmp.lt.s32.totalorder %s43, 1
        %s863 = scalar_select %p862, %s43, 1
        %s864 = scalar_lea.vmem %s16, %s863
        %p865 = scmp.lt.s32.totalorder %s43, 1
        %s866 = scalar_select %p865, %s43, 1
        %s867 = scalar_lea.vmem %s17, %s866
        %p869 = scmp.eq.s32.totalorder %s43, 0
        // Predicated region
        $region105: #{mixtext_forward.1} parent=91 // pred_check
          %p870 = pneg %p869
        $region106: #{mixtext_forward.1} parent=91 // pred_check_branch
          %872 = sbr.rel (%p870) target = $region108
        $region107: #{mixtext_forward.1} parent=91 // pred_region
          %v873 = vld [vmem:[%s829] sm:$0xff]
          %v874 = vld [vmem:[%s1] sm:$0xff]
          %v875 = vadd.f32 %v873, %v874
          %v876 = vld [vmem:[%s833] sm:$0xff]
          %v877 = vadd.f32 %v875, %v876
          %v878 = vld [vmem:[%s3] sm:$0x1]
          %v879 = vld [vmem:[%s4] sm:$0x1]
          %880 = vadd.xlane.f32.xlu0 %v877
          %v881 = vpop.xlane.xlu0 %880
          %v882 = vrcp.pop 128.0
          %v883 = vmul.f32 %v881, %v882
          %v884 = vsub.f32 %v877, %v883
          %v885 = vmul.f32 %v884, %v884
          %886 = vadd.xlane.f32.xlu0 %v885
          %v887 = vpop.xlane.xlu0 %886
          %v888 = vmul.f32 %v887, %v882
          %v889 = vadd.f32 %v888, 1e-12
          %v890 = vrsqrt.pop %v889
          %v891 = vmul.f32 %v884, %v890
          %v893 = vlaneseq
          %v894 = vshrl.u32 %v893, 7
          %v895 = vsub.s32 0, %v894
          %v896 = vrot.slane %v878, %v895
          %v898 = vmul.f32 %v891, %v896
          %v900 = vlaneseq
          %v901 = vshrl.u32 %v900, 7
          %v902 = vsub.s32 0, %v901
          %v903 = vrot.slane %v879, %v902
          %v905 = vadd.f32 %v898, %v903
          %906 = vst [vmem:[#allocation2] sm:$0xff] %v905
        $region108: #{mixtext_forward.1} parent=91 // pred_fallthru
          _
        %v907 = vld [vmem:[#allocation2] sm:$0xff]
        %v908 = vpack.c.bf16 %v907, %v907
        %v909 = vld [vmem:[%s704] sm:$0xff]
        %v910 = vld [vmem:[%s704 + $0x8] sm:$0xf]
        %v911 = vld [vmem:[%s704 + $0xc] sm:$0xff]
        %v912 = vld [vmem:[%s704 + $0x14] sm:$0xf]
        %v913 = vld [vmem:[%s704 + $0x18] sm:$0xff]
        %v914 = vld [vmem:[%s704 + $0x20] sm:$0xf]
        %v915 = vld [vmem:[%s704 + $0x24] sm:$0xff]
        %v916 = vld [vmem:[%s704 + $0x2c] sm:$0xf]
        %v917 = vld [vmem:[%s704 + $0x30] sm:$0xff]
        %v918 = vld [vmem:[%s704 + $0x38] sm:$0xf]
        %v919 = vld [vmem:[%s704 + $0x3c] sm:$0xff]
        %v920 = vld [vmem:[%s704 + $0x44] sm:$0xf]
        %v921 = vld [vmem:[%s704 + $0x48] sm:$0xff]
        %v922 = vld [vmem:[%s704 + $0x50] sm:$0xf]
        %v923 = vld [vmem:[%s704 + $0x54] sm:$0xff]
        %v924 = vld [vmem:[%s704 + $0x5c] sm:$0xf]
        %v925 = vld [vmem:[%s704 + $0x60] sm:$0xff]
        %v926 = vld [vmem:[%s704 + $0x68] sm:$0xf]
        %v927 = vld [vmem:[%s704 + $0x6c] sm:$0xff]
        %v928 = vld [vmem:[%s704 + $0x74] sm:$0xf]
        %v929 = vld [vmem:[%s704 + $0x78] sm:$0xff]
        %v930 = vld [vmem:[%s704 + $0x80] sm:$0xf]
        %v931 = vld [vmem:[%s704 + $0x84] sm:$0xff]
        %v932 = vld [vmem:[%s704 + $0x8c] sm:$0xf]
        %v933 = vld [vmem:[%s704 + $0x90] sm:$0xff]
        %v934 = vld [vmem:[%s704 + $0x98] sm:$0xf]
        %v935 = vld [vmem:[%s704 + $0x9c] sm:$0xff]
        %v936 = vld [vmem:[%s704 + $0xa4] sm:$0xf]
        %v937 = vld [vmem:[%s704 + $0xa8] sm:$0xff]
        %v938 = vld [vmem:[%s704 + $0xb0] sm:$0xf]
        %v939 = vld [vmem:[%s704 + $0xb4] sm:$0xff]
        %v940 = vld [vmem:[%s704 + $0xbc] sm:$0xf]
        %v941 = vld [vmem:[%s840] sm:$0x7]
        %v943 = vlaneseq
        %v944 = vshrl.u32 %v943, 7
        %v945 = vsub.s32 0, %v944
        %v946 = vrot.slane %v941, %v945
        %v947 = vlaneseq
        %v948 = vshrl.u32 %v947, 7
        %v949 = vsub.s32 1, %v948
        %v950 = vrot.slane %v941, %v949
        %v951 = vlaneseq
        %v952 = vshrl.u32 %v951, 7
        %v953 = vsub.s32 2, %v952
        %v954 = vrot.slane %v941, %v953
        %v990 = vunpack.c.l.b16 %v909
        %v991 = vunpack.c.h.b16 %v909
        %v992 = vunpack.c.l.b16 %v910
        %v993 = vunpack.c.l.b16 %v911
        %v994 = vunpack.c.h.b16 %v911
        %v995 = vunpack.c.l.b16 %v912
        %v996 = vunpack.c.l.b16 %v913
        %v997 = vunpack.c.h.b16 %v913
        %v998 = vunpack.c.l.b16 %v914
        %v999 = vunpack.c.l.b16 %v915
        %v1000 = vunpack.c.h.b16 %v915
        %v1001 = vunpack.c.l.b16 %v916
        %v1002 = vunpack.c.l.b16 %v917
        %v1003 = vunpack.c.h.b16 %v917
        %v1004 = vunpack.c.l.b16 %v918
        %v1005 = vunpack.c.l.b16 %v919
        %v1006 = vunpack.c.h.b16 %v919
        %v1007 = vunpack.c.l.b16 %v920
        %v1008 = vunpack.c.l.b16 %v921
        %v1009 = vunpack.c.h.b16 %v921
        %v1010 = vunpack.c.l.b16 %v922
        %v1011 = vunpack.c.l.b16 %v923
        %v1012 = vunpack.c.h.b16 %v923
        %v1013 = vunpack.c.l.b16 %v924
        %v1014 = vunpack.c.l.b16 %v925
        %v1015 = vunpack.c.h.b16 %v925
        %v1016 = vunpack.c.l.b16 %v926
        %v1017 = vunpack.c.l.b16 %v927
        %v1018 = vunpack.c.h.b16 %v927
        %v1019 = vunpack.c.l.b16 %v928
        %v1020 = vunpack.c.l.b16 %v929
        %v1021 = vunpack.c.h.b16 %v929
        %v1022 = vunpack.c.l.b16 %v930
        %v1023 = vunpack.c.l.b16 %v931
        %v1024 = vunpack.c.h.b16 %v931
        %v1025 = vunpack.c.l.b16 %v932
        %v1026 = vunpack.c.l.b16 %v933
        %v1027 = vunpack.c.h.b16 %v933
        %v1028 = vunpack.c.l.b16 %v934
        %v1029 = vunpack.c.l.b16 %v935
        %v1030 = vunpack.c.h.b16 %v935
        %v1031 = vunpack.c.l.b16 %v936
        %v1032 = vunpack.c.l.b16 %v937
        %v1033 = vunpack.c.h.b16 %v937
        %v1034 = vunpack.c.l.b16 %v938
        %v1035 = vunpack.c.l.b16 %v939
        %v1036 = vunpack.c.h.b16 %v939
        %v1037 = vunpack.c.l.b16 %v940
        %v1038 = vpack.c.b16 %v993, %v990
        %v1039 = vpack.c.b16 %v994, %v991
        %v1040 = vpack.c.b16 %v995, %v992
        %v1041 = vpack.c.b16 %v999, %v996
        %v1042 = vpack.c.b16 %v1000, %v997
        %v1043 = vpack.c.b16 %v1001, %v998
        %v1044 = vpack.c.b16 %v1005, %v1002
        %v1045 = vpack.c.b16 %v1006, %v1003
        %v1046 = vpack.c.b16 %v1007, %v1004
        %v1047 = vpack.c.b16 %v1011, %v1008
        %v1048 = vpack.c.b16 %v1012, %v1009
        %v1049 = vpack.c.b16 %v1013, %v1010
        %v1050 = vpack.c.b16 %v1017, %v1014
        %v1051 = vpack.c.b16 %v1018, %v1015
        %v1052 = vpack.c.b16 %v1019, %v1016
        %v1053 = vpack.c.b16 %v1023, %v1020
        %v1054 = vpack.c.b16 %v1024, %v1021
        %v1055 = vpack.c.b16 %v1025, %v1022
        %v1056 = vpack.c.b16 %v1029, %v1026
        %v1057 = vpack.c.b16 %v1030, %v1027
        %v1058 = vpack.c.b16 %v1031, %v1028
        %v1059 = vpack.c.b16 %v1035, %v1032
        %v1060 = vpack.c.b16 %v1036, %v1033
        %v1061 = vpack.c.b16 %v1037, %v1034
        %1086 = vmatprep.subr.bf16.mxu0 %v1060
        %1087 = vmatpush1.bf16.msra.mxu0 %v1059
        %1088 = vmatprep.subr.bf16.mxu0 %v1057
        %1089 = vmatpush1.bf16.msra.mxu0 %v1056
        %1090 = vmatprep.subr.bf16.mxu0 %v1054
        %1091 = vmatpush1.bf16.msra.mxu0 %v1053
        %1092 = vmatprep.subr.bf16.mxu0 %v1051
        %1093 = vmatpush1.bf16.msra.mxu0 %v1050
        %1094 = vmatprep.subr.bf16.mxu0 %v1048
        %1095 = vmatpush1.bf16.msra.mxu0 %v1047
        %1096 = vmatprep.subr.bf16.mxu0 %v1045
        %1097 = vmatpush1.bf16.msra.mxu0 %v1044
        %1098 = vmatprep.subr.bf16.mxu0 %v1042
        %1099 = vmatpush1.bf16.msra.mxu0 %v1041
        %1100 = vmatprep.subr.bf16.mxu0 %v1039
        %1101 = vmatpush1.bf16.msra.mxu0 %v1038
        %1102 = vmatprep.subr.bf16.mxu0 0
        %1103 = vmatpush2.bf16.msra.mxu0 0
        %1104 = vmatprep.subr.bf16.mxu0 0
        %1105 = vmatpush2.bf16.msra.mxu0 0
        %1106 = vmatprep.subr.bf16.mxu0 0
        %1107 = vmatpush2.bf16.msra.mxu0 0
        %1108 = vmatprep.subr.bf16.mxu0 0
        %1109 = vmatpush2.bf16.msra.mxu0 0
        %1110 = vmatprep.subr.bf16.mxu0 0
        %1111 = vmatpush2.bf16.msra.mxu0 0
        %1112 = vmatprep.subr.bf16.mxu0 0
        %1113 = vmatpush2.bf16.msra.mxu0 0
        %1114 = vmatprep.subr.bf16.mxu0 0
        %1115 = vmatpush2.bf16.msra.mxu0 0
        %1116 = vmatprep.subr.bf16.mxu0 0
        %1117 = vmatpush2.bf16.msra.mxu0 0
        %1118 = vmatprep.mubr.bf16.mxu0 0
        %1119 = vmatmul.mubr.bf16.gmra.mxu0 %v908
        %v1120 = vpop.f32.mrf.mxu0
        %v1121 = vadd.f32 %v946, %v1120
        %v1122 = vpop.f32.mrf.mxu0
        %v1123 = vadd.f32 %v950, %v1122
        %v1124 = vpop.f32.mrf.mxu0
        %v1125 = vpop.f32.mrf.mxu0
        %1126 = vdwg.mxu0
        %1127 = vmatprep.subr.bf16.mxu0 0
        %1128 = vmatpush1.bf16.msra.mxu0 %v1061
        %1129 = vmatprep.subr.bf16.mxu0 0
        %1130 = vmatpush1.bf16.msra.mxu0 %v1058
        %1131 = vmatprep.subr.bf16.mxu0 0
        %1132 = vmatpush1.bf16.msra.mxu0 %v1055
        %1133 = vmatprep.subr.bf16.mxu0 0
        %1134 = vmatpush1.bf16.msra.mxu0 %v1052
        %1135 = vmatprep.subr.bf16.mxu0 0
        %1136 = vmatpush1.bf16.msra.mxu0 %v1049
        %1137 = vmatprep.subr.bf16.mxu0 0
        %1138 = vmatpush1.bf16.msra.mxu0 %v1046
        %1139 = vmatprep.subr.bf16.mxu0 0
        %1140 = vmatpush1.bf16.msra.mxu0 %v1043
        %1141 = vmatprep.subr.bf16.mxu0 0
        %1142 = vmatpush1.bf16.msra.mxu0 %v1040
        %1143 = vmatprep.subr.bf16.mxu0 0
        %1144 = vmatpush2.bf16.msra.mxu0 0
        %1145 = vmatprep.subr.bf16.mxu0 0
        %1146 = vmatpush2.bf16.msra.mxu0 0
        %1147 = vmatprep.subr.bf16.mxu0 0
        %1148 = vmatpush2.bf16.msra.mxu0 0
        %1149 = vmatprep.subr.bf16.mxu0 0
        %1150 = vmatpush2.bf16.msra.mxu0 0
        %1151 = vmatprep.subr.bf16.mxu0 0
        %1152 = vmatpush2.bf16.msra.mxu0 0
        %1153 = vmatprep.subr.bf16.mxu0 0
        %1154 = vmatpush2.bf16.msra.mxu0 0
        %1155 = vmatprep.subr.bf16.mxu0 0
        %1156 = vmatpush2.bf16.msra.mxu0 0
        %1157 = vmatprep.subr.bf16.mxu0 0
        %1158 = vmatpush2.bf16.msra.mxu0 0
        %1159 = vmatprep.mubr.bf16.mxu0 0
        %1160 = vmatmul.mubr.bf16.gmra.mxu0 %v908
        %v1161 = vpop.f32.mrf.mxu0
        %v1162 = vadd.f32 %v954, %v1161
        %v1163 = vpop.f32.mrf.mxu0
        %v1164 = vpop.f32.mrf.mxu0
        %v1165 = vpop.f32.mrf.mxu0
        %1166 = vdwg.mxu0
        %1168 = vrot.lane.b32.xlu0 %v1121, 64
        %v1169 = vpop.permute.xlu0 %1168
        %1171 = vrot.lane.b32.xlu0 %v1123, 64
        %v1172 = vpop.permute.xlu0 %1171
        %1174 = vrot.lane.b32.xlu0 %v1162, 64
        %v1175 = vpop.permute.xlu0 %1174
        %v1177 = vld [vmem:[%s836] sm:$0x1]
        %vm1178 = vcmask 523264
        %v1179 = vsel %vm1178, %v1121, 0
        %v1181 = vsel %vm1178, %v1123, 0
        %1183 = vmatprep.subr.mxu0 0.0
        %1184 = vmatpush1.xpose.msra.mxu0 0.0
        %1185 = vmatprep.subr.mxu0 0.0
        %1186 = vmatpush1.xpose.msra.mxu0 0.0
        %1187 = vmatprep.subr.mxu0 0.0
        %1188 = vmatpush1.xpose.msra.mxu0 0.0
        %1189 = vmatprep.subr.mxu0 0.0
        %1190 = vmatpush1.xpose.msra.mxu0 0.0
        %1191 = vmatprep.subr.mxu0 0.0
        %1192 = vmatpush1.xpose.msra.mxu0 0.0
        %1193 = vmatprep.subr.mxu0 0.0
        %1194 = vmatpush1.xpose.msra.mxu0 0.0
        %1195 = vmatprep.subr.mxu0 0.0
        %1196 = vmatpush1.xpose.msra.mxu0 0.0
        %1197 = vmatprep.subr.mxu0 0.0
        %1198 = vmatpush1.xpose.msra.mxu0 0.0
        %1199 = vmatprep.subr.mxu0 0.0
        %1200 = vmatpush1.xpose.msra.mxu0 0.0
        %1201 = vmatprep.subr.mxu0 0.0
        %1202 = vmatpush1.xpose.msra.mxu0 0.0
        %1203 = vmatprep.subr.mxu0 0.0
        %1204 = vmatpush1.xpose.msra.mxu0 0.0
        %1205 = vmatprep.subr.mxu0 0.0
        %1206 = vmatpush1.xpose.msra.mxu0 0.0
        %1207 = vmatprep.subr.mxu0 0.0
        %1208 = vmatpush1.xpose.msra.mxu0 0.0
        %1209 = vmatprep.subr.mxu0 0.0
        %1210 = vmatpush1.xpose.msra.mxu0 0.0
        %1211 = vmatprep.subr.mxu0 0.0
        %1212 = vmatpush1.xpose.msra.mxu0 0.0
        %1213 = vmatprep.subr.mxu0 0.0
        %1214 = vmatpush1.xpose.msra.mxu0 %v1181
        %1215 = vmatprep.subr.mxu0 0.0
        %1216 = vmatpush2.xpose.msra.mxu0 0.0
        %1217 = vmatprep.subr.mxu0 0.0
        %1218 = vmatpush2.xpose.msra.mxu0 0.0
        %1219 = vmatprep.subr.mxu0 0.0
        %1220 = vmatpush2.xpose.msra.mxu0 0.0
        %1221 = vmatprep.subr.mxu0 0.0
        %1222 = vmatpush2.xpose.msra.mxu0 0.0
        %1223 = vmatprep.subr.mxu0 0.0
        %1224 = vmatpush2.xpose.msra.mxu0 0.0
        %1225 = vmatprep.subr.mxu0 0.0
        %1226 = vmatpush2.xpose.msra.mxu0 0.0
        %1227 = vmatprep.subr.mxu0 0.0
        %1228 = vmatpush2.xpose.msra.mxu0 0.0
        %1229 = vmatprep.subr.mxu0 0.0
        %1230 = vmatpush2.xpose.msra.mxu0 0.0
        %1231 = vmatprep.subr.mxu0 0.0
        %1232 = vmatpush2.xpose.msra.mxu0 0.0
        %1233 = vmatprep.subr.mxu0 0.0
        %1234 = vmatpush2.xpose.msra.mxu0 0.0
        %1235 = vmatprep.subr.mxu0 0.0
        %1236 = vmatpush2.xpose.msra.mxu0 0.0
        %1237 = vmatprep.subr.mxu0 0.0
        %1238 = vmatpush2.xpose.msra.mxu0 0.0
        %1239 = vmatprep.subr.mxu0 0.0
        %1240 = vmatpush2.xpose.msra.mxu0 0.0
        %1241 = vmatprep.subr.mxu0 0.0
        %1242 = vmatpush2.xpose.msra.mxu0 0.0
        %1243 = vmatprep.subr.mxu0 0.0
        %1244 = vmatpush2.xpose.msra.mxu0 0.0
        %1245 = vmatprep.subr.mxu0 0.0
        %1246 = vmatpush2.xpose.msra.mxu0 0.0
        %1247 = vmatprep.mubr.f32.mxu0 0.0
        %1248 = vmatmul.mubr.f32.gmra.mxu0 %v1179
        %v1249 = vpop.f32.mrf.mxu0
        %v1250 = vadd.f32 0.0, %v1249
        %v1251 = vpop.f32.mrf.mxu0
        %1252 = vdwg.mxu0
        %v1253 = vsel %vm1178, %v1169, 0
        %v1255 = vsel %vm1178, %v1172, 0
        %1257 = vmatprep.subr.mxu0 0.0
        %1258 = vmatpush1.xpose.msra.mxu0 0.0
        %1259 = vmatprep.subr.mxu0 0.0
        %1260 = vmatpush1.xpose.msra.mxu0 0.0
        %1261 = vmatprep.subr.mxu0 0.0
        %1262 = vmatpush1.xpose.msra.mxu0 0.0
        %1263 = vmatprep.subr.mxu0 0.0
        %1264 = vmatpush1.xpose.msra.mxu0 0.0
        %1265 = vmatprep.subr.mxu0 0.0
        %1266 = vmatpush1.xpose.msra.mxu0 0.0
        %1267 = vmatprep.subr.mxu0 0.0
        %1268 = vmatpush1.xpose.msra.mxu0 0.0
        %1269 = vmatprep.subr.mxu0 0.0
        %1270 = vmatpush1.xpose.msra.mxu0 0.0
        %1271 = vmatprep.subr.mxu0 0.0
        %1272 = vmatpush1.xpose.msra.mxu0 0.0
        %1273 = vmatprep.subr.mxu0 0.0
        %1274 = vmatpush1.xpose.msra.mxu0 0.0
        %1275 = vmatprep.subr.mxu0 0.0
        %1276 = vmatpush1.xpose.msra.mxu0 0.0
        %1277 = vmatprep.subr.mxu0 0.0
        %1278 = vmatpush1.xpose.msra.mxu0 0.0
        %1279 = vmatprep.subr.mxu0 0.0
        %1280 = vmatpush1.xpose.msra.mxu0 0.0
        %1281 = vmatprep.subr.mxu0 0.0
        %1282 = vmatpush1.xpose.msra.mxu0 0.0
        %1283 = vmatprep.subr.mxu0 0.0
        %1284 = vmatpush1.xpose.msra.mxu0 0.0
        %1285 = vmatprep.subr.mxu0 0.0
        %1286 = vmatpush1.xpose.msra.mxu0 0.0
        %1287 = vmatprep.subr.mxu0 0.0
        %1288 = vmatpush1.xpose.msra.mxu0 %v1255
        %1289 = vmatprep.subr.mxu0 0.0
        %1290 = vmatpush2.xpose.msra.mxu0 0.0
        %1291 = vmatprep.subr.mxu0 0.0
        %1292 = vmatpush2.xpose.msra.mxu0 0.0
        %1293 = vmatprep.subr.mxu0 0.0
        %1294 = vmatpush2.xpose.msra.mxu0 0.0
        %1295 = vmatprep.subr.mxu0 0.0
        %1296 = vmatpush2.xpose.msra.mxu0 0.0
        %1297 = vmatprep.subr.mxu0 0.0
        %1298 = vmatpush2.xpose.msra.mxu0 0.0
        %1299 = vmatprep.subr.mxu0 0.0
        %1300 = vmatpush2.xpose.msra.mxu0 0.0
        %1301 = vmatprep.subr.mxu0 0.0
        %1302 = vmatpush2.xpose.msra.mxu0 0.0
        %1303 = vmatprep.subr.mxu0 0.0
        %1304 = vmatpush2.xpose.msra.mxu0 0.0
        %1305 = vmatprep.subr.mxu0 0.0
        %1306 = vmatpush2.xpose.msra.mxu0 0.0
        %1307 = vmatprep.subr.mxu0 0.0
        %1308 = vmatpush2.xpose.msra.mxu0 0.0
        %1309 = vmatprep.subr.mxu0 0.0
        %1310 = vmatpush2.xpose.msra.mxu0 0.0
        %1311 = vmatprep.subr.mxu0 0.0
        %1312 = vmatpush2.xpose.msra.mxu0 0.0
        %1313 = vmatprep.subr.mxu0 0.0
        %1314 = vmatpush2.xpose.msra.mxu0 0.0
        %1315 = vmatprep.subr.mxu0 0.0
        %1316 = vmatpush2.xpose.msra.mxu0 0.0
        %1317 = vmatprep.subr.mxu0 0.0
        %1318 = vmatpush2.xpose.msra.mxu0 0.0
        %1319 = vmatprep.subr.mxu0 0.0
        %1320 = vmatpush2.xpose.msra.mxu0 0.0
        %1321 = vmatprep.mubr.f32.mxu0 0.0
        %1322 = vmatmul.mubr.f32.gmra.mxu0 %v1253
        %v1323 = vpop.f32.mrf.mxu0
        %v1324 = vadd.f32 0.0, %v1323
        %v1325 = vpop.f32.mrf.mxu0
        %1326 = vdwg.mxu0
        %v1327 = vmul.f32 %v1250, 0.125
        %v1328 = vmul.f32 %v1324, 0.125
        %v1330 = vlaneseq
        %v1331 = vshrl.u32 %v1330, 7
        %v1332 = vsub.s32 0, %v1331
        %v1333 = vrot.slane %v1177, %v1332
        %v1335 = vadd.f32 %v1327, %v1333
        %v1336 = vadd.f32 %v1328, %v1333
        %vm1337 = vcmask 64512
        %v1338 = vsel %vm1337, %v1335, -inf
        %1339 = vmax.xlane.f32.xlu0 %v1338
        %v1340 = vpop.xlane.xlu0 %1339
        %v1341 = vsel %vm1337, %v1336, -inf
        %1342 = vmax.xlane.f32.xlu0 %v1341
        %v1343 = vpop.xlane.xlu0 %1342
        %v1344 = vsub.f32 %v1335, %v1340
        %v1345 = vsub.f32 %v1336, %v1343
        %v1346 = vmul.f32 %v1344, 1.442695
        %v1347 = vpow.pop %v1346
        %v1348 = vmul.f32 %v1345, 1.442695
        %v1349 = vpow.pop %v1348
        %v1350 = vsel %vm1337, %v1347, 0.0
        %1351 = vadd.xlane.f32.xlu0 %v1350
        %v1352 = vpop.xlane.xlu0 %1351
        %v1353 = vsel %vm1337, %v1349, 0.0
        %1354 = vadd.xlane.f32.xlu0 %v1353
        %v1355 = vpop.xlane.xlu0 %1354
        %v1356 = vrcp.pop %v1352
        %v1357 = vrcp.pop %v1355
        %v1358 = vmul.f32 %v1347, %v1356
        %v1359 = vmul.f32 %v1349, %v1357
        %v1361 = vsel %vm1337, %v1358, 0
        %1363 = vmatprep.subr.mxu0 0.0
        %1364 = vmatpush1.msra.mxu0 0.0
        %1365 = vmatprep.subr.mxu0 0.0
        %1366 = vmatpush1.msra.mxu0 0.0
        %1367 = vmatprep.subr.mxu0 0.0
        %1368 = vmatpush1.msra.mxu0 0.0
        %1369 = vmatprep.subr.mxu0 0.0
        %1370 = vmatpush1.msra.mxu0 0.0
        %1371 = vmatprep.subr.mxu0 0.0
        %1372 = vmatpush1.msra.mxu0 0.0
        %1373 = vmatprep.subr.mxu0 0.0
        %1374 = vmatpush1.msra.mxu0 0.0
        %1375 = vmatprep.subr.mxu0 0.0
        %1376 = vmatpush1.msra.mxu0 0.0
        %1377 = vmatprep.subr.mxu0 0.0
        %1378 = vmatpush1.msra.mxu0 0.0
        %1379 = vmatprep.subr.mxu0 0.0
        %1380 = vmatpush1.msra.mxu0 0.0
        %1381 = vmatprep.subr.mxu0 0.0
        %1382 = vmatpush1.msra.mxu0 0.0
        %1383 = vmatprep.subr.mxu0 0.0
        %1384 = vmatpush1.msra.mxu0 0.0
        %1385 = vmatprep.subr.mxu0 0.0
        %1386 = vmatpush1.msra.mxu0 0.0
        %1387 = vmatprep.subr.mxu0 0.0
        %1388 = vmatpush1.msra.mxu0 0.0
        %1389 = vmatprep.subr.mxu0 0.0
        %1390 = vmatpush1.msra.mxu0 0.0
        %1391 = vmatprep.subr.mxu0 0.0
        %1392 = vmatpush1.msra.mxu0 0.0
        %1393 = vmatprep.subr.mxu0 0.0
        %1394 = vmatpush1.msra.mxu0 %v1162
        %1395 = vmatprep.subr.mxu0 0.0
        %1396 = vmatpush2.msra.mxu0 0.0
        %1397 = vmatprep.subr.mxu0 0.0
        %1398 = vmatpush2.msra.mxu0 0.0
        %1399 = vmatprep.subr.mxu0 0.0
        %1400 = vmatpush2.msra.mxu0 0.0
        %1401 = vmatprep.subr.mxu0 0.0
        %1402 = vmatpush2.msra.mxu0 0.0
        %1403 = vmatprep.subr.mxu0 0.0
        %1404 = vmatpush2.msra.mxu0 0.0
        %1405 = vmatprep.subr.mxu0 0.0
        %1406 = vmatpush2.msra.mxu0 0.0
        %1407 = vmatprep.subr.mxu0 0.0
        %1408 = vmatpush2.msra.mxu0 0.0
        %1409 = vmatprep.subr.mxu0 0.0
        %1410 = vmatpush2.msra.mxu0 0.0
        %1411 = vmatprep.subr.mxu0 0.0
        %1412 = vmatpush2.msra.mxu0 0.0
        %1413 = vmatprep.subr.mxu0 0.0
        %1414 = vmatpush2.msra.mxu0 0.0
        %1415 = vmatprep.subr.mxu0 0.0
        %1416 = vmatpush2.msra.mxu0 0.0
        %1417 = vmatprep.subr.mxu0 0.0
        %1418 = vmatpush2.msra.mxu0 0.0
        %1419 = vmatprep.subr.mxu0 0.0
        %1420 = vmatpush2.msra.mxu0 0.0
        %1421 = vmatprep.subr.mxu0 0.0
        %1422 = vmatpush2.msra.mxu0 0.0
        %1423 = vmatprep.subr.mxu0 0.0
        %1424 = vmatpush2.msra.mxu0 0.0
        %1425 = vmatprep.subr.mxu0 0.0
        %1426 = vmatpush2.msra.mxu0 0.0
        %1427 = vmatprep.mubr.f32.mxu0 0.0
        %1428 = vmatmul.mubr.f32.gmra.mxu0 %v1361
        %v1429 = vpop.f32.mrf.mxu0
        %v1430 = vadd.f32 0.0, %v1429
        %v1431 = vpop.f32.mrf.mxu0
        %1432 = vdwg.mxu0
        %v1434 = vsel %vm1337, %v1359, 0
        %1436 = vmatprep.subr.mxu0 0.0
        %1437 = vmatpush1.msra.mxu0 0.0
        %1438 = vmatprep.subr.mxu0 0.0
        %1439 = vmatpush1.msra.mxu0 0.0
        %1440 = vmatprep.subr.mxu0 0.0
        %1441 = vmatpush1.msra.mxu0 0.0
        %1442 = vmatprep.subr.mxu0 0.0
        %1443 = vmatpush1.msra.mxu0 0.0
        %1444 = vmatprep.subr.mxu0 0.0
        %1445 = vmatpush1.msra.mxu0 0.0
        %1446 = vmatprep.subr.mxu0 0.0
        %1447 = vmatpush1.msra.mxu0 0.0
        %1448 = vmatprep.subr.mxu0 0.0
        %1449 = vmatpush1.msra.mxu0 0.0
        %1450 = vmatprep.subr.mxu0 0.0
        %1451 = vmatpush1.msra.mxu0 0.0
        %1452 = vmatprep.subr.mxu0 0.0
        %1453 = vmatpush1.msra.mxu0 0.0
        %1454 = vmatprep.subr.mxu0 0.0
        %1455 = vmatpush1.msra.mxu0 0.0
        %1456 = vmatprep.subr.mxu0 0.0
        %1457 = vmatpush1.msra.mxu0 0.0
        %1458 = vmatprep.subr.mxu0 0.0
        %1459 = vmatpush1.msra.mxu0 0.0
        %1460 = vmatprep.subr.mxu0 0.0
        %1461 = vmatpush1.msra.mxu0 0.0
        %1462 = vmatprep.subr.mxu0 0.0
        %1463 = vmatpush1.msra.mxu0 0.0
        %1464 = vmatprep.subr.mxu0 0.0
        %1465 = vmatpush1.msra.mxu0 0.0
        %1466 = vmatprep.subr.mxu0 0.0
        %1467 = vmatpush1.msra.mxu0 %v1175
        %1468 = vmatprep.subr.mxu0 0.0
        %1469 = vmatpush2.msra.mxu0 0.0
        %1470 = vmatprep.subr.mxu0 0.0
        %1471 = vmatpush2.msra.mxu0 0.0
        %1472 = vmatprep.subr.mxu0 0.0
        %1473 = vmatpush2.msra.mxu0 0.0
        %1474 = vmatprep.subr.mxu0 0.0
        %1475 = vmatpush2.msra.mxu0 0.0
        %1476 = vmatprep.subr.mxu0 0.0
        %1477 = vmatpush2.msra.mxu0 0.0
        %1478 = vmatprep.subr.mxu0 0.0
        %1479 = vmatpush2.msra.mxu0 0.0
        %1480 = vmatprep.subr.mxu0 0.0
        %1481 = vmatpush2.msra.mxu0 0.0
        %1482 = vmatprep.subr.mxu0 0.0
        %1483 = vmatpush2.msra.mxu0 0.0
        %1484 = vmatprep.subr.mxu0 0.0
        %1485 = vmatpush2.msra.mxu0 0.0
        %1486 = vmatprep.subr.mxu0 0.0
        %1487 = vmatpush2.msra.mxu0 0.0
        %1488 = vmatprep.subr.mxu0 0.0
        %1489 = vmatpush2.msra.mxu0 0.0
        %1490 = vmatprep.subr.mxu0 0.0
        %1491 = vmatpush2.msra.mxu0 0.0
        %1492 = vmatprep.subr.mxu0 0.0
        %1493 = vmatpush2.msra.mxu0 0.0
        %1494 = vmatprep.subr.mxu0 0.0
        %1495 = vmatpush2.msra.mxu0 0.0
        %1496 = vmatprep.subr.mxu0 0.0
        %1497 = vmatpush2.msra.mxu0 0.0
        %1498 = vmatprep.subr.mxu0 0.0
        %1499 = vmatpush2.msra.mxu0 0.0
        %1500 = vmatprep.mubr.f32.mxu0 0.0
        %1501 = vmatmul.mubr.f32.gmra.mxu0 %v1434
        %v1502 = vpop.f32.mrf.mxu0
        %v1503 = vadd.f32 0.0, %v1502
        %v1504 = vpop.f32.mrf.mxu0
        %1505 = vdwg.mxu0
        %1507 = vrot.lane.b32.xlu0 %v1503, 64
        %v1508 = vpop.permute.xlu0 %1507
        %v1510 = vsel %vm1178, %v1430, %v1508
        %v1511 = vpack.c.bf16 %v1510, %v1510
        %v1512 = vld [vmem:[%s845] sm:$0xf]
        %v1513 = vld [vmem:[%s845 + $0x4] sm:$0xf]
        %v1514 = vld [vmem:[%s845 + $0x8] sm:$0xf]
        %v1515 = vld [vmem:[%s845 + $0xc] sm:$0xf]
        %v1516 = vld [vmem:[%s845 + $0x10] sm:$0xf]
        %v1517 = vld [vmem:[%s845 + $0x14] sm:$0xf]
        %v1518 = vld [vmem:[%s845 + $0x18] sm:$0xf]
        %v1519 = vld [vmem:[%s845 + $0x1c] sm:$0xf]
        %v1520 = vld [vmem:[%s845 + $0x20] sm:$0xf]
        %v1521 = vld [vmem:[%s845 + $0x24] sm:$0xf]
        %v1522 = vld [vmem:[%s845 + $0x28] sm:$0xf]
        %v1523 = vld [vmem:[%s845 + $0x2c] sm:$0xf]
        %v1524 = vld [vmem:[%s845 + $0x30] sm:$0xf]
        %v1525 = vld [vmem:[%s845 + $0x34] sm:$0xf]
        %v1526 = vld [vmem:[%s845 + $0x38] sm:$0xf]
        %v1527 = vld [vmem:[%s845 + $0x3c] sm:$0xf]
        %v1528 = vld [vmem:[%s848] sm:$0x1]
        %v1530 = vlaneseq
        %v1531 = vshrl.u32 %v1530, 7
        %v1532 = vsub.s32 0, %v1531
        %v1533 = vrot.slane %v1528, %v1532
        %v1551 = vunpack.c.l.b16 %v1512
        %v1552 = vunpack.c.l.b16 %v1513
        %v1553 = vunpack.c.l.b16 %v1514
        %v1554 = vunpack.c.l.b16 %v1515
        %v1555 = vunpack.c.l.b16 %v1516
        %v1556 = vunpack.c.l.b16 %v1517
        %v1557 = vunpack.c.l.b16 %v1518
        %v1558 = vunpack.c.l.b16 %v1519
        %v1559 = vunpack.c.l.b16 %v1520
        %v1560 = vunpack.c.l.b16 %v1521
        %v1561 = vunpack.c.l.b16 %v1522
        %v1562 = vunpack.c.l.b16 %v1523
        %v1563 = vunpack.c.l.b16 %v1524
        %v1564 = vunpack.c.l.b16 %v1525
        %v1565 = vunpack.c.l.b16 %v1526
        %v1566 = vunpack.c.l.b16 %v1527
        %v1567 = vpack.c.b16 %v1552, %v1551
        %v1568 = vpack.c.b16 %v1554, %v1553
        %v1569 = vpack.c.b16 %v1556, %v1555
        %v1570 = vpack.c.b16 %v1558, %v1557
        %v1571 = vpack.c.b16 %v1560, %v1559
        %v1572 = vpack.c.b16 %v1562, %v1561
        %v1573 = vpack.c.b16 %v1564, %v1563
        %v1574 = vpack.c.b16 %v1566, %v1565
        %1583 = vmatprep.subr.bf16.mxu0 0
        %1584 = vmatpush1.bf16.msra.mxu0 %v1574
        %1585 = vmatprep.subr.bf16.mxu0 0
        %1586 = vmatpush1.bf16.msra.mxu0 %v1573
        %1587 = vmatprep.subr.bf16.mxu0 0
        %1588 = vmatpush1.bf16.msra.mxu0 %v1572
        %1589 = vmatprep.subr.bf16.mxu0 0
        %1590 = vmatpush1.bf16.msra.mxu0 %v1571
        %1591 = vmatprep.subr.bf16.mxu0 0
        %1592 = vmatpush1.bf16.msra.mxu0 %v1570
        %1593 = vmatprep.subr.bf16.mxu0 0
        %1594 = vmatpush1.bf16.msra.mxu0 %v1569
        %1595 = vmatprep.subr.bf16.mxu0 0
        %1596 = vmatpush1.bf16.msra.mxu0 %v1568
        %1597 = vmatprep.subr.bf16.mxu0 0
        %1598 = vmatpush1.bf16.msra.mxu0 %v1567
        %1599 = vmatprep.subr.bf16.mxu0 0
        %1600 = vmatpush2.bf16.msra.mxu0 0
        %1601 = vmatprep.subr.bf16.mxu0 0
        %1602 = vmatpush2.bf16.msra.mxu0 0
        %1603 = vmatprep.subr.bf16.mxu0 0
        %1604 = vmatpush2.bf16.msra.mxu0 0
        %1605 = vmatprep.subr.bf16.mxu0 0
        %1606 = vmatpush2.bf16.msra.mxu0 0
        %1607 = vmatprep.subr.bf16.mxu0 0
        %1608 = vmatpush2.bf16.msra.mxu0 0
        %1609 = vmatprep.subr.bf16.mxu0 0
        %1610 = vmatpush2.bf16.msra.mxu0 0
        %1611 = vmatprep.subr.bf16.mxu0 0
        %1612 = vmatpush2.bf16.msra.mxu0 0
        %1613 = vmatprep.subr.bf16.mxu0 0
        %1614 = vmatpush2.bf16.msra.mxu0 0
        %1615 = vmatprep.mubr.bf16.mxu0 0
        %1616 = vmatmul.mubr.bf16.gmra.mxu0 %v1511
        %v1617 = vpop.f32.mrf.mxu0
        %v1618 = vadd.f32 %v1533, %v1617
        %v1619 = vpop.f32.mrf.mxu0
        %v1620 = vpop.f32.mrf.mxu0
        %v1621 = vpop.f32.mrf.mxu0
        %1622 = vdwg.mxu0
        %v1623 = vadd.f32 %v1618, %v907
        %v1624 = vld [vmem:[%s851] sm:$0x1]
        %v1625 = vld [vmem:[%s854] sm:$0x1]
        %1626 = vadd.xlane.f32.xlu0 %v1623
        %v1627 = vpop.xlane.xlu0 %1626
        %v1628 = vrcp.pop 128.0
        %v1629 = vmul.f32 %v1627, %v1628
        %v1630 = vsub.f32 %v1623, %v1629
        %v1631 = vmul.f32 %v1630, %v1630
        %1632 = vadd.xlane.f32.xlu0 %v1631
        %v1633 = vpop.xlane.xlu0 %1632
        %v1634 = vmul.f32 %v1633, %v1628
        %v1635 = vadd.f32 %v1634, 1e-12
        %v1636 = vrsqrt.pop %v1635
        %v1637 = vmul.f32 %v1630, %v1636
        %v1639 = vlaneseq
        %v1640 = vshrl.u32 %v1639, 7
        %v1641 = vsub.s32 0, %v1640
        %v1642 = vrot.slane %v1624, %v1641
        %v1644 = vmul.f32 %v1637, %v1642
        %v1646 = vlaneseq
        %v1647 = vshrl.u32 %v1646, 7
        %v1648 = vsub.s32 0, %v1647
        %v1649 = vrot.slane %v1625, %v1648
        %v1651 = vadd.f32 %v1644, %v1649
        %v1652 = vpack.c.bf16 %v1651, %v1651
        %v1653 = vld [vmem:[%s713] sm:$0xff]
        %v1654 = vld [vmem:[%s713 + $0x8] sm:$0xff]
        %v1655 = vld [vmem:[%s713 + $0x10] sm:$0xff]
        %v1656 = vld [vmem:[%s713 + $0x18] sm:$0xff]
        %v1657 = vld [vmem:[%s713 + $0x20] sm:$0xff]
        %v1658 = vld [vmem:[%s713 + $0x28] sm:$0xff]
        %v1659 = vld [vmem:[%s713 + $0x30] sm:$0xff]
        %v1660 = vld [vmem:[%s713 + $0x38] sm:$0xff]
        %v1661 = vld [vmem:[%s713 + $0x40] sm:$0xff]
        %v1662 = vld [vmem:[%s713 + $0x48] sm:$0xff]
        %v1663 = vld [vmem:[%s713 + $0x50] sm:$0xff]
        %v1664 = vld [vmem:[%s713 + $0x58] sm:$0xff]
        %v1665 = vld [vmem:[%s713 + $0x60] sm:$0xff]
        %v1666 = vld [vmem:[%s713 + $0x68] sm:$0xff]
        %v1667 = vld [vmem:[%s713 + $0x70] sm:$0xff]
        %v1668 = vld [vmem:[%s713 + $0x78] sm:$0xff]
        %v1669 = vld [vmem:[%s858] sm:$0x3]
        %v1671 = vlaneseq
        %v1672 = vshrl.u32 %v1671, 7
        %v1673 = vsub.s32 0, %v1672
        %v1674 = vrot.slane %v1669, %v1673
        %v1675 = vlaneseq
        %v1676 = vshrl.u32 %v1675, 7
        %v1677 = vsub.s32 1, %v1676
        %v1678 = vrot.slane %v1669, %v1677
        %v1697 = vunpack.c.l.b16 %v1653
        %v1698 = vunpack.c.h.b16 %v1653
        %v1699 = vunpack.c.l.b16 %v1654
        %v1700 = vunpack.c.h.b16 %v1654
        %v1701 = vunpack.c.l.b16 %v1655
        %v1702 = vunpack.c.h.b16 %v1655
        %v1703 = vunpack.c.l.b16 %v1656
        %v1704 = vunpack.c.h.b16 %v1656
        %v1705 = vunpack.c.l.b16 %v1657
        %v1706 = vunpack.c.h.b16 %v1657
        %v1707 = vunpack.c.l.b16 %v1658
        %v1708 = vunpack.c.h.b16 %v1658
        %v1709 = vunpack.c.l.b16 %v1659
        %v1710 = vunpack.c.h.b16 %v1659
        %v1711 = vunpack.c.l.b16 %v1660
        %v1712 = vunpack.c.h.b16 %v1660
        %v1713 = vunpack.c.l.b16 %v1661
        %v1714 = vunpack.c.h.b16 %v1661
        %v1715 = vunpack.c.l.b16 %v1662
        %v1716 = vunpack.c.h.b16 %v1662
        %v1717 = vunpack.c.l.b16 %v1663
        %v1718 = vunpack.c.h.b16 %v1663
        %v1719 = vunpack.c.l.b16 %v1664
        %v1720 = vunpack.c.h.b16 %v1664
        %v1721 = vunpack.c.l.b16 %v1665
        %v1722 = vunpack.c.h.b16 %v1665
        %v1723 = vunpack.c.l.b16 %v1666
        %v1724 = vunpack.c.h.b16 %v1666
        %v1725 = vunpack.c.l.b16 %v1667
        %v1726 = vunpack.c.h.b16 %v1667
        %v1727 = vunpack.c.l.b16 %v1668
        %v1728 = vunpack.c.h.b16 %v1668
        %v1729 = vpack.c.b16 %v1699, %v1697
        %v1730 = vpack.c.b16 %v1700, %v1698
        %v1731 = vpack.c.b16 %v1703, %v1701
        %v1732 = vpack.c.b16 %v1704, %v1702
        %v1733 = vpack.c.b16 %v1707, %v1705
        %v1734 = vpack.c.b16 %v1708, %v1706
        %v1735 = vpack.c.b16 %v1711, %v1709
        %v1736 = vpack.c.b16 %v1712, %v1710
        %v1737 = vpack.c.b16 %v1715, %v1713
        %v1738 = vpack.c.b16 %v1716, %v1714
        %v1739 = vpack.c.b16 %v1719, %v1717
        %v1740 = vpack.c.b16 %v1720, %v1718
        %v1741 = vpack.c.b16 %v1723, %v1721
        %v1742 = vpack.c.b16 %v1724, %v1722
        %v1743 = vpack.c.b16 %v1727, %v1725
        %v1744 = vpack.c.b16 %v1728, %v1726
        %1761 = vmatprep.subr.bf16.mxu0 %v1744
        %1762 = vmatpush1.bf16.msra.mxu0 %v1743
        %1763 = vmatprep.subr.bf16.mxu0 %v1742
        %1764 = vmatpush1.bf16.msra.mxu0 %v1741
        %1765 = vmatprep.subr.bf16.mxu0 %v1740
        %1766 = vmatpush1.bf16.msra.mxu0 %v1739
        %1767 = vmatprep.subr.bf16.mxu0 %v1738
        %1768 = vmatpush1.bf16.msra.mxu0 %v1737
        %1769 = vmatprep.subr.bf16.mxu0 %v1736
        %1770 = vmatpush1.bf16.msra.mxu0 %v1735
        %1771 = vmatprep.subr.bf16.mxu0 %v1734
        %1772 = vmatpush1.bf16.msra.mxu0 %v1733
        %1773 = vmatprep.subr.bf16.mxu0 %v1732
        %1774 = vmatpush1.bf16.msra.mxu0 %v1731
        %1775 = vmatprep.subr.bf16.mxu0 %v1730
        %1776 = vmatpush1.bf16.msra.mxu0 %v1729
        %1777 = vmatprep.subr.bf16.mxu0 0
        %1778 = vmatpush2.bf16.msra.mxu0 0
        %1779 = vmatprep.subr.bf16.mxu0 0
        %1780 = vmatpush2.bf16.msra.mxu0 0
        %1781 = vmatprep.subr.bf16.mxu0 0
        %1782 = vmatpush2.bf16.msra.mxu0 0
        %1783 = vmatprep.subr.bf16.mxu0 0
        %1784 = vmatpush2.bf16.msra.mxu0 0
        %1785 = vmatprep.subr.bf16.mxu0 0
        %1786 = vmatpush2.bf16.msra.mxu0 0
        %1787 = vmatprep.subr.bf16.mxu0 0
        %1788 = vmatpush2.bf16.msra.mxu0 0
        %1789 = vmatprep.subr.bf16.mxu0 0
        %1790 = vmatpush2.bf16.msra.mxu0 0
        %1791 = vmatprep.subr.bf16.mxu0 0
        %1792 = vmatpush2.bf16.msra.mxu0 0
        %1793 = vmatprep.mubr.bf16.mxu0 0
        %1794 = vmatmul.mubr.bf16.gmra.mxu0 %v1652
        %v1795 = vpop.f32.mrf.mxu0
        %v1796 = vadd.f32 %v1674, %v1795
        %v1797 = vpop.f32.mrf.mxu0
        %v1798 = vadd.f32 %v1678, %v1797
        %v1799 = vpop.f32.mrf.mxu0
        %v1800 = vpop.f32.mrf.mxu0
        %1801 = vdwg.mxu0
        %v1802 = vmul.f32 %v1796, 0.5
        %v1803 = vmul.f32 %v1798, 0.5
        %v1804 = vmul.f32 %v1796, 0.044715
        %v1805 = vmul.f32 %v1798, 0.044715
        %v1806 = vmul.f32 %v1804, %v1796
        %v1807 = vmul.f32 %v1805, %v1798
        %v1808 = vmul.f32 %v1806, %v1796
        %v1809 = vmul.f32 %v1807, %v1798
        %v1810 = vadd.f32 %v1796, %v1808
        %v1811 = vadd.f32 %v1798, %v1809
        %v1812 = vmul.f32 %v1810, 0.7978846
        %v1813 = vmul.f32 %v1811, 0.7978846
        %v1814 = vtanh.pop %v1812
        %v1815 = vtanh.pop %v1813
        %v1816 = vadd.f32 %v1814, 1.0
        %v1817 = vadd.f32 %v1815, 1.0
        %v1818 = vmul.f32 %v1802, %v1816
        %v1819 = vmul.f32 %v1803, %v1817
        %v1820 = vpack.c.bf16 %v1818, %v1818
        %v1821 = vpack.c.bf16 %v1819, %v1819
        %v1822 = vld [vmem:[%s722] sm:$0xf]
        %v1823 = vld [vmem:[%s722 + $0x4] sm:$0xf]
        %v1824 = vld [vmem:[%s722 + $0x8] sm:$0xf]
        %v1825 = vld [vmem:[%s722 + $0xc] sm:$0xf]
        %v1826 = vld [vmem:[%s722 + $0x10] sm:$0xf]
        %v1827 = vld [vmem:[%s722 + $0x14] sm:$0xf]
        %v1828 = vld [vmem:[%s722 + $0x18] sm:$0xf]
        %v1829 = vld [vmem:[%s722 + $0x1c] sm:$0xf]
        %v1830 = vld [vmem:[%s722 + $0x20] sm:$0xf]
        %v1831 = vld [vmem:[%s722 + $0x24] sm:$0xf]
        %v1832 = vld [vmem:[%s722 + $0x28] sm:$0xf]
        %v1833 = vld [vmem:[%s722 + $0x2c] sm:$0xf]
        %v1834 = vld [vmem:[%s722 + $0x30] sm:$0xf]
        %v1835 = vld [vmem:[%s722 + $0x34] sm:$0xf]
        %v1836 = vld [vmem:[%s722 + $0x38] sm:$0xf]
        %v1837 = vld [vmem:[%s722 + $0x3c] sm:$0xf]
        %v1838 = vld [vmem:[%s722 + $0x40] sm:$0xf]
        %v1839 = vld [vmem:[%s722 + $0x44] sm:$0xf]
        %v1840 = vld [vmem:[%s722 + $0x48] sm:$0xf]
        %v1841 = vld [vmem:[%s722 + $0x4c] sm:$0xf]
        %v1842 = vld [vmem:[%s722 + $0x50] sm:$0xf]
        %v1843 = vld [vmem:[%s722 + $0x54] sm:$0xf]
        %v1844 = vld [vmem:[%s722 + $0x58] sm:$0xf]
        %v1845 = vld [vmem:[%s722 + $0x5c] sm:$0xf]
        %v1846 = vld [vmem:[%s722 + $0x60] sm:$0xf]
        %v1847 = vld [vmem:[%s722 + $0x64] sm:$0xf]
        %v1848 = vld [vmem:[%s722 + $0x68] sm:$0xf]
        %v1849 = vld [vmem:[%s722 + $0x6c] sm:$0xf]
        %v1850 = vld [vmem:[%s722 + $0x70] sm:$0xf]
        %v1851 = vld [vmem:[%s722 + $0x74] sm:$0xf]
        %v1852 = vld [vmem:[%s722 + $0x78] sm:$0xf]
        %v1853 = vld [vmem:[%s722 + $0x7c] sm:$0xf]
        %v1854 = vld [vmem:[%s861] sm:$0x1]
        %v1856 = vlaneseq
        %v1857 = vshrl.u32 %v1856, 7
        %v1858 = vsub.s32 0, %v1857
        %v1859 = vrot.slane %v1854, %v1858
        %v1893 = vunpack.c.l.b16 %v1822
        %v1894 = vunpack.c.l.b16 %v1823
        %v1895 = vunpack.c.l.b16 %v1824
        %v1896 = vunpack.c.l.b16 %v1825
        %v1897 = vunpack.c.l.b16 %v1826
        %v1898 = vunpack.c.l.b16 %v1827
        %v1899 = vunpack.c.l.b16 %v1828
        %v1900 = vunpack.c.l.b16 %v1829
        %v1901 = vunpack.c.l.b16 %v1830
        %v1902 = vunpack.c.l.b16 %v1831
        %v1903 = vunpack.c.l.b16 %v1832
        %v1904 = vunpack.c.l.b16 %v1833
        %v1905 = vunpack.c.l.b16 %v1834
        %v1906 = vunpack.c.l.b16 %v1835
        %v1907 = vunpack.c.l.b16 %v1836
        %v1908 = vunpack.c.l.b16 %v1837
        %v1909 = vunpack.c.l.b16 %v1838
        %v1910 = vunpack.c.l.b16 %v1839
        %v1911 = vunpack.c.l.b16 %v1840
        %v1912 = vunpack.c.l.b16 %v1841
        %v1913 = vunpack.c.l.b16 %v1842
        %v1914 = vunpack.c.l.b16 %v1843
        %v1915 = vunpack.c.l.b16 %v1844
        %v1916 = vunpack.c.l.b16 %v1845
        %v1917 = vunpack.c.l.b16 %v1846
        %v1918 = vunpack.c.l.b16 %v1847
        %v1919 = vunpack.c.l.b16 %v1848
        %v1920 = vunpack.c.l.b16 %v1849
        %v1921 = vunpack.c.l.b16 %v1850
        %v1922 = vunpack.c.l.b16 %v1851
        %v1923 = vunpack.c.l.b16 %v1852
        %v1924 = vunpack.c.l.b16 %v1853
        %v1925 = vpack.c.b16 %v1894, %v1893
        %v1926 = vpack.c.b16 %v1896, %v1895
        %v1927 = vpack.c.b16 %v1898, %v1897
        %v1928 = vpack.c.b16 %v1900, %v1899
        %v1929 = vpack.c.b16 %v1902, %v1901
        %v1930 = vpack.c.b16 %v1904, %v1903
        %v1931 = vpack.c.b16 %v1906, %v1905
        %v1932 = vpack.c.b16 %v1908, %v1907
        %v1933 = vpack.c.b16 %v1910, %v1909
        %v1934 = vpack.c.b16 %v1912, %v1911
        %v1935 = vpack.c.b16 %v1914, %v1913
        %v1936 = vpack.c.b16 %v1916, %v1915
        %v1937 = vpack.c.b16 %v1918, %v1917
        %v1938 = vpack.c.b16 %v1920, %v1919
        %v1939 = vpack.c.b16 %v1922, %v1921
        %v1940 = vpack.c.b16 %v1924, %v1923
        %1957 = vmatprep.subr.bf16.mxu0 0
        %1958 = vmatpush1.bf16.msra.mxu0 %v1932
        %1959 = vmatprep.subr.bf16.mxu0 0
        %1960 = vmatpush1.bf16.msra.mxu0 %v1931
        %1961 = vmatprep.subr.bf16.mxu0 0
        %1962 = vmatpush1.bf16.msra.mxu0 %v1930
        %1963 = vmatprep.subr.bf16.mxu0 0
        %1964 = vmatpush1.bf16.msra.mxu0 %v1929
        %1965 = vmatprep.subr.bf16.mxu0 0
        %1966 = vmatpush1.bf16.msra.mxu0 %v1928
        %1967 = vmatprep.subr.bf16.mxu0 0
        %1968 = vmatpush1.bf16.msra.mxu0 %v1927
        %1969 = vmatprep.subr.bf16.mxu0 0
        %1970 = vmatpush1.bf16.msra.mxu0 %v1926
        %1971 = vmatprep.subr.bf16.mxu0 0
        %1972 = vmatpush1.bf16.msra.mxu0 %v1925
        %1973 = vmatprep.subr.bf16.mxu0 0
        %1974 = vmatpush2.bf16.msra.mxu0 %v1940
        %1975 = vmatprep.subr.bf16.mxu0 0
        %1976 = vmatpush2.bf16.msra.mxu0 %v1939
        %1977 = vmatprep.subr.bf16.mxu0 0
        %1978 = vmatpush2.bf16.msra.mxu0 %v1938
        %1979 = vmatprep.subr.bf16.mxu0 0
        %1980 = vmatpush2.bf16.msra.mxu0 %v1937
        %1981 = vmatprep.subr.bf16.mxu0 0
        %1982 = vmatpush2.bf16.msra.mxu0 %v1936
        %1983 = vmatprep.subr.bf16.mxu0 0
        %1984 = vmatpush2.bf16.msra.mxu0 %v1935
        %1985 = vmatprep.subr.bf16.mxu0 0
        %1986 = vmatpush2.bf16.msra.mxu0 %v1934
        %1987 = vmatprep.subr.bf16.mxu0 0
        %1988 = vmatpush2.bf16.msra.mxu0 %v1933
        %1989 = vmatprep.mubr.bf16.mxu0 %v1821
        %1990 = vmatmul.mubr.bf16.gmra.mxu0 %v1820
        %v1991 = vpop.f32.mrf.mxu0
        %v1992 = vadd.f32 %v1859, %v1991
        %v1993 = vpop.f32.mrf.mxu0
        %v1994 = vpop.f32.mrf.mxu0
        %v1995 = vpop.f32.mrf.mxu0
        %1996 = vdwg.mxu0
        %v1997 = vadd.f32 %v1992, %v1651
        %v1998 = vld [vmem:[%s864] sm:$0x1]
        %v1999 = vld [vmem:[%s867] sm:$0x1]
        %2000 = vadd.xlane.f32.xlu0 %v1997
        %v2001 = vpop.xlane.xlu0 %2000
        %v2002 = vmul.f32 %v2001, %v1628
        %v2003 = vsub.f32 %v1997, %v2002
        %v2004 = vmul.f32 %v2003, %v2003
        %2005 = vadd.xlane.f32.xlu0 %v2004
        %v2006 = vpop.xlane.xlu0 %2005
        %v2007 = vmul.f32 %v2006, %v1628
        %v2008 = vadd.f32 %v2007, 1e-12
        %v2009 = vrsqrt.pop %v2008
        %v2010 = vmul.f32 %v2003, %v2009
        %v2012 = vlaneseq
        %v2013 = vshrl.u32 %v2012, 7
        %v2014 = vsub.s32 0, %v2013
        %v2015 = vrot.slane %v1998, %v2014
        %v2017 = vmul.f32 %v2010, %v2015
        %v2019 = vlaneseq
        %v2020 = vshrl.u32 %v2019, 7
        %v2021 = vsub.s32 0, %v2020
        %v2022 = vrot.slane %v1999, %v2021
        %v2024 = vadd.f32 %v2017, %v2022
        %2025 = vst [vmem:[#allocation2] sm:$0xff] %v2024
        %p2026 = scmp.eq.s32.totalorder %s43, 1
        // Predicated region
        $region109: #{mixtext_forward.1} parent=91 // pred_check
          %p2027 = pneg %p2026
        $region110: #{mixtext_forward.1} parent=91 // pred_check_branch
          %2029 = sbr.rel (%p2027) target = $region112
        $region111: #{mixtext_forward.1} parent=91 // pred_region
          %v2030 = vrot.slane %v2024, 4
          %v2031 = vadd.f32 %v2024, %v2030
          %v2032 = vrot.slane %v2031, 2
          %v2033 = vadd.f32 %v2031, %v2032
          %v2034 = vrot.slane %v2033, 1
          %v2035 = vadd.f32 %v2033, %v2034
          %v2036 = vrcp.pop 8.0
          %v2037 = vmul.f32 %v2035, %v2036
          %2038 = vst [vmem:[%s825] sm:$0x1] %v2037
        $region112: #{mixtext_forward.1} parent=91 // pred_fallthru
          _
        %s2039 = sand.u32 %s511, 1
        %s2040 = scalar_lea.sflag [#allocation5], %s2039
        %s2041 = sand.u32 %s511, 1
        %s2042 = scalar_lea.vmem [#allocation9], %s2041
        // Predicated region
        $region113: #{mixtext_forward.1} parent=91 // pred_check
          %p2043 = pneg %p521
        $region114: #{mixtext_forward.1} parent=91 // pred_check_branch
          %2045 = sbr.rel (%p2043) target = $region116
        $region115: #{mixtext_forward.1} parent=91 // pred_region
          %s2047 = ssub.s32 16, 16
          %2048 = vsyncadd %s2040, %s2047
          %s2049 = smul.addr %s42, 16
          %s2050 = scalar_lea.hbm %s18, %s2049
          %s2052 = sshll.u32 %s2042, 4
          %s2053 = int_to_ptr.vmem [resolvable:$true] %s2052
          %2055 = dma.vmem_to_hbm [thread:$0]  %s2053, 16, %s2050, %s2040
        $region116: #{mixtext_forward.1} parent=91 // pred_fallthru
          _
      $region92: #{mixtext_forward.1} parent=5 // pred_fallthru
        _
      %p2056 = scmp.le.s32.totalorder 2, %s33
      // Predicated region
      $region117: #{mixtext_forward.1} parent=5 // pred_check
        %p2057 = pneg %p2056
      $region118: #{mixtext_forward.1} parent=5 // pred_check_branch
        %2059 = sbr.rel (%p2057) target = $region120
      $region119: #{mixtext_forward.1} parent=5 // pred_region
        %s2060 = ssub.s32 %s33, 2
        // Predicated region
        $region121: #{mixtext_forward.1} parent=119 // pred_check
          %p2061 = pneg %p527
        $region122: #{mixtext_forward.1} parent=119 // pred_check_branch
          %2063 = sbr.rel (%p2061) target = $region124
        $region123: #{mixtext_forward.1} parent=119 // pred_region
          %s2064 = sand.u32 %s512, 1
          %s2065 = scalar_lea.sflag [#allocation5], %s2064
          %s2066 = sand.u32 %s512, 1
          %s2067 = scalar_lea.vmem [#allocation9], %s2066
          %2068 = dma.done %s2065, 16
        $region124: #{mixtext_forward.1} parent=119 // pred_fallthru
          _
      $region120: #{mixtext_forward.1} parent=5 // pred_fallthru
        _
    $region6: #{mixtext_forward.1} parent=1 // loop_footer
      %s37 = sadd.s32 1, %s33
    $region7: #{mixtext_forward.1} parent=1 // loop_footer_branch
      %32 = sbr.rel target = $region3
    $region8: #{mixtext_forward.1} parent=1 // loop_exit
      _
    %2069 = vsyncpa [#allocation4], 1
    %s2070 = scalar_lea.sflag [#allocation4], 1
    %2071 = vsyncpa %s2070, 1
    %2072 = vsyncpa [#allocation7], 1
    %s2073 = scalar_lea.sflag [#allocation7], 1
    %2074 = vsyncpa %s2073, 1
    %2075 = vsyncpa [#allocation5], 1
    %s2076 = scalar_lea.sflag [#allocation5], 1
    %2077 = vsyncpa %s2076, 1

</llo_original>
